<compile_context>
chip_gen: v7x
topology: tpu7x:2x2x1
jax: 0.10.0
libtpu: 0.0.40
codegen_flags: <defaults>
</compile_context>

<pallas_src>
import jax
import jax.numpy as jnp
from jax.experimental import pallas as pl
from jax.experimental.pallas import tpu as pltpu


def _mlp_kernel(xT_ref, w1_ref, b1_ref, w2_ref, b2_ref, w3_ref, b3_ref, oT_ref):
    # xT_ref: (3, TB) feature-major input tile; oT_ref: (4, TB) output tile.
    xT = xT_ref[...]                                    # already float32
    hi = jax.lax.Precision.HIGHEST

    # fc1 + ReLU:  (24,3) @ (3,TB) -> (24,TB)
    h1 = jnp.dot(w1_ref[...], xT, preferred_element_type=jnp.float32, precision=hi)
    h1 = jnp.maximum(h1 + b1_ref[...], 0.0)             # (24,TB) + (24,1)

    # fc2 + ReLU:  (24,24) @ (24,TB) -> (24,TB)
    h2 = jnp.dot(w2_ref[...], h1, preferred_element_type=jnp.float32, precision=hi)
    h2 = jnp.maximum(h2 + b2_ref[...], 0.0)

    # fc3 (no activation):  (4,24) @ (24,TB) -> (4,TB)
    y = jnp.dot(w3_ref[...], h2, preferred_element_type=jnp.float32, precision=hi)
    oT_ref[...] = (y + b3_ref[...]).astype(oT_ref.dtype)


def _round_up(n, m):
    return ((n + m - 1) // m) * m


def net_forward(x, params, *, tb=32768, feature_major_output=False):
    """x: (batch, 3). params: dict with w1(24,3), b1(24,1), w2(24,24), b2(24,1),
    w3(4,24), b3(4,1). Returns (batch, 4) float32 (or (4, batch) if
    feature_major_output=True)."""
    w1, b1 = params["w1"], params["b1"]
    w2, b2 = params["w2"], params["b2"]
    w3, b3 = params["w3"], params["b3"]

    batch = x.shape[0]
    in_f = w1.shape[1]
    out_f = w3.shape[0]

    # ---- Tile-size selection -------------------------------------------------
    # * tb must be a multiple of 128 (lane constraint on the block's last dim).
    # * Don't over-size tiles for small batches, and split largish batches into
    #   at least 2 tiles so ("parallel",) can feed both TensorCores on v7x.
    tb = _round_up(max(int(tb), 128), 128)
    tb = min(tb, max(128, _round_up(-(-batch // 2), 128)))
    grid = (pl.cdiv(batch, tb),)

    # Feature-major input: batch on the 128-lane axis. This is one extra HBM
    # pass; if the producer already holds x feature-major, feed it directly.
    # No jnp.pad: the ragged tail tile is read padded / store-masked by Pallas.
    xT = jnp.transpose(x.astype(jnp.float32))           # (in_f, batch)

    # Weights/biases: full-extent blocks, constant index_map -> VMEM-resident.
    full = lambda a: pl.BlockSpec(a.shape, lambda i: (0, 0))

    outT = pl.pallas_call(
        _mlp_kernel,
        out_shape=jax.ShapeDtypeStruct((out_f, batch), jnp.float32),
        grid=grid,
        in_specs=[
            pl.BlockSpec((in_f, tb), lambda i: (0, i)),   # x^T batch tile
            full(w1), full(b1),
            full(w2), full(b2),
            full(w3), full(b3),
        ],
        out_specs=pl.BlockSpec((out_f, tb), lambda i: (0, i)),
        compiler_params=pltpu.CompilerParams(
            dimension_semantics=("parallel",),            # megacore sharding (v7x)
            vmem_limit_bytes=48 * 1024 * 1024,            # above v5e's 16 MiB default,
                                                          # below v7x's 64 MiB physical
        ),
    )(xT, w1, b1, w2, b2, w3, b3)

    if feature_major_output:
        return outT                        # (4, batch), lane-dense, no extra pass
    return jnp.transpose(outT)             # (batch, 4) to match the PyTorch module


def init_params(key):
    """Deterministic init mimicking nn.Linear (W: (out,in), b: (out,1))."""
    k1, k2, k3, k4, k5, k6 = jax.random.split(key, 6)

    def linear(kw, kb, fan_in, fan_out):
        bound = 1.0 / jnp.sqrt(jnp.float32(fan_in))
        w = jax.random.uniform(kw, (fan_out, fan_in), jnp.float32, -bound, bound)
        b = jax.random.uniform(kb, (fan_out, 1), jnp.float32, -bound, bound)
        return w, b

    w1, b1 = linear(k1, k2, 3, 24)
    w2, b2 = linear(k3, k4, 24, 24)
    w3, b3 = linear(k5, k6, 24, 4)
    return {"w1": w1, "b1": b1, "w2": w2, "b2": b2, "w3": w3, "b3": b3}


def _reference_forward(x, params):
    hi = jax.lax.Precision.HIGHEST
    x = x.astype(jnp.float32)
    h1 = jnp.maximum(jnp.dot(x, params["w1"].T, precision=hi) + params["b1"].T, 0.0)
    h2 = jnp.maximum(jnp.dot(h1, params["w2"].T, precision=hi) + params["b2"].T, 0.0)
    return jnp.dot(h2, params["w3"].T, precision=hi) + params["b3"].T


if __name__ == "__main__":
    key = jax.random.PRNGKey(0)
    k_x, k_x2, k_p = jax.random.split(key, 3)
    params = init_params(k_p)

    # 1) Small batch (single ragged tile: block lane-dim 128 > batch 8).
    batch = 8
    x = jax.random.normal(k_x, (batch, 3), dtype=jnp.float32)
    out = jax.block_until_ready(net_forward(x, params))
    ref = _reference_forward(x, params)
    assert out.shape == (batch, 4), out.shape
    assert jnp.allclose(out, ref, atol=1e-4, rtol=1e-4), "mismatch vs reference"

    # 2) Multi-tile + ragged tail with default tile selection (grid=2, tb=256).
    batch2 = 300
    x2 = jax.random.normal(k_x2, (batch2, 3), dtype=jnp.float32)
    out2 = jax.block_until_ready(net_forward(x2, params))
    ref2 = _reference_forward(x2, params)
    assert out2.shape == (batch2, 4), out2.shape
    assert jnp.allclose(out2, ref2, atol=1e-4, rtol=1e-4), "mismatch (tiled) vs reference"

    # 3) Explicit small tile (grid=3) + feature-major output path.
    out3 = jax.block_until_ready(net_forward(x2, params, tb=128, feature_major_output=True))
    assert out3.shape == (4, batch2), out3.shape
    assert jnp.allclose(out3.T, ref2, atol=1e-4, rtol=1e-4), "mismatch (tb=128) vs reference"

    print("KERNEL_OK")
</pallas_src>

<mosaic_0001>
module attributes {stable_mosaic.version = 11 : i64} {
  func.func @_mlp_kernel(%arg0: i32, %arg1: memref<3x128xf32, #tpu.memory_space<vmem>>, %arg2: memref<24x3xf32, #tpu.memory_space<vmem>>, %arg3: memref<24x1xf32, #tpu.memory_space<vmem>>, %arg4: memref<24x24xf32, #tpu.memory_space<vmem>>, %arg5: memref<24x1xf32, #tpu.memory_space<vmem>>, %arg6: memref<4x24xf32, #tpu.memory_space<vmem>>, %arg7: memref<4x1xf32, #tpu.memory_space<vmem>>, %arg8: memref<4x128xf32, #tpu.memory_space<vmem>>) attributes {dimension_semantics = [#tpu.dimension_semantics<parallel>], iteration_bounds = array<i64: 1>, scalar_prefetch = 0 : i64, scratch_operands = 0 : i64, tpu.core_type = #tpu.core_type<tc>, window_params = [{transform_indices = @transform_0, window_bounds = array<i64: 3, 128>}, {pipeline_mode = #tpu.pipeline_mode<synchronous>, transform_indices = @transform_1, window_bounds = array<i64: 24, 3>}, {pipeline_mode = #tpu.pipeline_mode<synchronous>, transform_indices = @transform_2, window_bounds = array<i64: 24, 1>}, {pipeline_mode = #tpu.pipeline_mode<synchronous>, transform_indices = @transform_3, window_bounds = array<i64: 24, 24>}, {pipeline_mode = #tpu.pipeline_mode<synchronous>, transform_indices = @transform_4, window_bounds = array<i64: 24, 1>}, {pipeline_mode = #tpu.pipeline_mode<synchronous>, transform_indices = @transform_5, window_bounds = array<i64: 4, 24>}, {pipeline_mode = #tpu.pipeline_mode<synchronous>, transform_indices = @transform_6, window_bounds = array<i64: 4, 1>}, {transform_indices = @transform_7, window_bounds = array<i64: 4, 128>}]} {
    %c0 = arith.constant 0 : index
    %c0_0 = arith.constant 0 : index
    %0 = vector.load %arg1[%c0, %c0_0] : memref<3x128xf32, #tpu.memory_space<vmem>>, vector<3x128xf32>
    %c0_1 = arith.constant 0 : index
    %c0_2 = arith.constant 0 : index
    %1 = vector.load %arg2[%c0_1, %c0_2] : memref<24x3xf32, #tpu.memory_space<vmem>>, vector<24x3xf32>
    %cst = arith.constant dense<0.000000e+00> : vector<24x128xf32>
    %2 = tpu.matmul %1, %0, %cst {dimension_numbers = #tpu.dot_dimension_numbers<[1], [0], [0], [1], [0, 0, 1, 1], [], []>, precision = #tpu.contract_precision<fp32>} : vector<24x3xf32>, vector<3x128xf32>, vector<24x128xf32> -> vector<24x128xf32>
    %c0_3 = arith.constant 0 : index
    %c0_4 = arith.constant 0 : index
    %3 = vector.load %arg3[%c0_3, %c0_4] : memref<24x1xf32, #tpu.memory_space<vmem>>, vector<24x1xf32>
    %4 = vector.broadcast %3 : vector<24x1xf32> to vector<24x128xf32>
    %5 = arith.addf %2, %4 : vector<24x128xf32>
    %cst_5 = arith.constant 0.000000e+00 : f32
    %6 = vector.broadcast %cst_5 : f32 to vector<24x128xf32>
    %7 = arith.maximumf %5, %6 : vector<24x128xf32>
    %c0_6 = arith.constant 0 : index
    %c0_7 = arith.constant 0 : index
    %8 = vector.load %arg4[%c0_6, %c0_7] : memref<24x24xf32, #tpu.memory_space<vmem>>, vector<24x24xf32>
    %cst_8 = arith.constant dense<0.000000e+00> : vector<24x128xf32>
    %9 = tpu.matmul %8, %7, %cst_8 {dimension_numbers = #tpu.dot_dimension_numbers<[1], [0], [0], [1], [0, 0, 1, 1], [], []>, precision = #tpu.contract_precision<fp32>} : vector<24x24xf32>, vector<24x128xf32>, vector<24x128xf32> -> vector<24x128xf32>
    %c0_9 = arith.constant 0 : index
    %c0_10 = arith.constant 0 : index
    %10 = vector.load %arg5[%c0_9, %c0_10] : memref<24x1xf32, #tpu.memory_space<vmem>>, vector<24x1xf32>
    %11 = vector.broadcast %10 : vector<24x1xf32> to vector<24x128xf32>
    %12 = arith.addf %9, %11 : vector<24x128xf32>
    %cst_11 = arith.constant 0.000000e+00 : f32
    %13 = vector.broadcast %cst_11 : f32 to vector<24x128xf32>
    %14 = arith.maximumf %12, %13 : vector<24x128xf32>
    %c0_12 = arith.constant 0 : index
    %c0_13 = arith.constant 0 : index
    %15 = vector.load %arg6[%c0_12, %c0_13] : memref<4x24xf32, #tpu.memory_space<vmem>>, vector<4x24xf32>
    %cst_14 = arith.constant dense<0.000000e+00> : vector<4x128xf32>
    %16 = tpu.matmul %15, %14, %cst_14 {dimension_numbers = #tpu.dot_dimension_numbers<[1], [0], [0], [1], [0, 0, 1, 1], [], []>, precision = #tpu.contract_precision<fp32>} : vector<4x24xf32>, vector<24x128xf32>, vector<4x128xf32> -> vector<4x128xf32>
    %c0_15 = arith.constant 0 : index
    %c0_16 = arith.constant 0 : index
    %17 = vector.load %arg7[%c0_15, %c0_16] : memref<4x1xf32, #tpu.memory_space<vmem>>, vector<4x1xf32>
    %18 = vector.broadcast %17 : vector<4x1xf32> to vector<4x128xf32>
    %19 = arith.addf %16, %18 : vector<4x128xf32>
    %c0_17 = arith.constant 0 : index
    %c0_18 = arith.constant 0 : index
    %20 = vector.load %arg8[%c0_17, %c0_18] : memref<4x128xf32, #tpu.memory_space<vmem>>, vector<4x128xf32>
    tpu.vector_store %arg8[%c0_17, %c0_18], %19 {strides = array<i32>} : memref<4x128xf32, #tpu.memory_space<vmem>>, vector<4x128xf32>,
    return
  }
  func.func @transform_0(%arg0: i32) -> (i32, i32) {
    %c0_i32 = arith.constant 0 : i32
    %c0_i32_0 = arith.constant 0 : i32
    return %c0_i32, %arg0 : i32, i32
  }
  func.func @transform_1(%arg0: i32) -> (i32, i32) {
    %c0_i32 = arith.constant 0 : i32
    %c0_i32_0 = arith.constant 0 : i32
    %c0_i32_1 = arith.constant 0 : i32
    return %c0_i32, %c0_i32_0 : i32, i32
  }
  func.func @transform_2(%arg0: i32) -> (i32, i32) {
    %c0_i32 = arith.constant 0 : i32
    %c0_i32_0 = arith.constant 0 : i32
    %c0_i32_1 = arith.constant 0 : i32
    return %c0_i32, %c0_i32_0 : i32, i32
  }
  func.func @transform_3(%arg0: i32) -> (i32, i32) {
    %c0_i32 = arith.constant 0 : i32
    %c0_i32_0 = arith.constant 0 : i32
    %c0_i32_1 = arith.constant 0 : i32
    return %c0_i32, %c0_i32_0 : i32, i32
  }
  func.func @transform_4(%arg0: i32) -> (i32, i32) {
    %c0_i32 = arith.constant 0 : i32
    %c0_i32_0 = arith.constant 0 : i32
    %c0_i32_1 = arith.constant 0 : i32
    return %c0_i32, %c0_i32_0 : i32, i32
  }
  func.func @transform_5(%arg0: i32) -> (i32, i32) {
    %c0_i32 = arith.constant 0 : i32
    %c0_i32_0 = arith.constant 0 : i32
    %c0_i32_1 = arith.constant 0 : i32
    return %c0_i32, %c0_i32_0 : i32, i32
  }
  func.func @transform_6(%arg0: i32) -> (i32, i32) {
    %c0_i32 = arith.constant 0 : i32
    %c0_i32_0 = arith.constant 0 : i32
    %c0_i32_1 = arith.constant 0 : i32
    return %c0_i32, %c0_i32_0 : i32, i32
  }
  func.func @transform_7(%arg0: i32) -> (i32, i32) {
    %c0_i32 = arith.constant 0 : i32
    %c0_i32_0 = arith.constant 0 : i32
    return %c0_i32, %arg0 : i32, i32
  }
}

</mosaic_0001>

<llo_original>
// kernel: tpu_custom_call.1
$region0: #{tpu_custom_call.1}
  #allocation0 [shape = 'u32[]', space=smem, size = 0x4, offset = 0x4, fixed_abs, tag = 'smem constant byte address 0x4 - core index']
  #allocation1 [shape = 'u32[144,128]{1,0:T(1,128)}', space=vmem, size = 0x12000, scoped, tag = 'internal scratch']
  %s0 = inlined_call_operand.vmem [shape: f32[3,8], index: 0, kind: input, shape index: {}]
  %s1 = inlined_call_operand.vmem [shape: f32[24,3], index: 1, kind: input, shape index: {}]
  %s2 = inlined_call_operand.vmem [shape: f32[24,1], index: 2, kind: input, shape index: {}]
  %s3 = inlined_call_operand.vmem [shape: f32[24,24], index: 3, kind: input, shape index: {}]
  %s4 = inlined_call_operand.vmem [shape: f32[24,1], index: 4, kind: input, shape index: {}]
  %s5 = inlined_call_operand.vmem [shape: f32[4,24], index: 5, kind: input, shape index: {}]
  %s6 = inlined_call_operand.vmem [shape: f32[4,1], index: 6, kind: input, shape index: {}]
  %s7 = inlined_call_operand.hbm [shape: f32[4,8], index: 7, kind: output, shape index: {}]
  %s8 = sld [smem:[#allocation0]]
  $region38: #{tpu_custom_call.1} parent=0
    _
  %s10 = ssub.s32 1, %s8
  %s11 = scalar_select 0, %s10, %s8
  $region1: #{tpu_custom_call.1} parent=0
    #allocation2 [shape = 'u8[2048]{0}', space=vmem, size = 0x800, scoped, tag = 'output window, operand 0, single buffered']
    #allocation3 [shape = 's32[1]{0}', space=sflag, size = 0x4, scoped, tag = 'scoped memory for tpu_custom_call.1']
    %12 = vsyncpa [#allocation3], 0
    // Predicated region
    $region2: #{tpu_custom_call.1} parent=1 // pred_check
      _
    $region3: #{tpu_custom_call.1} parent=1 // pred_check_branch
      %14 = sbr.rel (0) target = $region5
    $region4: #{tpu_custom_call.1} parent=1 // pred_region
      _
    $region5: #{tpu_custom_call.1} parent=1 // pred_fallthru
      _
    // Predicated region
    $region6: #{tpu_custom_call.1} parent=1 // pred_check
      _
    $region7: #{tpu_custom_call.1} parent=1 // pred_check_branch
      %16 = sbr.rel (0) target = $region9
    $region8: #{tpu_custom_call.1} parent=1 // pred_region
      _
    $region9: #{tpu_custom_call.1} parent=1 // pred_fallthru
      _
    // Predicated region
    $region10: #{tpu_custom_call.1} parent=1 // pred_check
      _
    $region11: #{tpu_custom_call.1} parent=1 // pred_check_branch
      %18 = sbr.rel (0) target = $region13
    $region12: #{tpu_custom_call.1} parent=1 // pred_region
      _
    $region13: #{tpu_custom_call.1} parent=1 // pred_fallthru
      _
    // Predicated region
    $region14: #{tpu_custom_call.1} parent=1 // pred_check
      _
    $region15: #{tpu_custom_call.1} parent=1 // pred_check_branch
      %20 = sbr.rel (0) target = $region17
    $region16: #{tpu_custom_call.1} parent=1 // pred_region
      _
    $region17: #{tpu_custom_call.1} parent=1 // pred_fallthru
      _
    // Predicated region
    $region18: #{tpu_custom_call.1} parent=1 // pred_check
      _
    $region19: #{tpu_custom_call.1} parent=1 // pred_check_branch
      %22 = sbr.rel (0) target = $region21
    $region20: #{tpu_custom_call.1} parent=1 // pred_region
      _
    $region21: #{tpu_custom_call.1} parent=1 // pred_fallthru
      _
    // Predicated region
    $region22: #{tpu_custom_call.1} parent=1 // pred_check
      _
    $region23: #{tpu_custom_call.1} parent=1 // pred_check_branch
      %24 = sbr.rel (0) target = $region25
    $region24: #{tpu_custom_call.1} parent=1 // pred_region
      _
    $region25: #{tpu_custom_call.1} parent=1 // pred_fallthru
      _
    // Predicated region
    $region26: #{tpu_custom_call.1} parent=1 // pred_check
      _
    $region27: #{tpu_custom_call.1} parent=1 // pred_check_branch
      %26 = sbr.rel (0) target = $region29
    $region28: #{tpu_custom_call.1} parent=1 // pred_region
      _
    $region29: #{tpu_custom_call.1} parent=1 // pred_fallthru
      _
    %v27 = vld [vmem:[%s0] sm:$0x7]
    %v28 = vld [vmem:[%s1] sm:$0xff]
    %v29 = vld [vmem:[%s1 + $0x8] sm:$0xff]
    %v30 = vld [vmem:[%s1 + $0x10] sm:$0xff]
    %v31 = vld [vmem:[%s2] sm:$0xff]
    %v32 = vld [vmem:[%s2 + $0x8] sm:$0xff]
    %v33 = vld [vmem:[%s2 + $0x10] sm:$0xff]
    %35 = vset.pattern.permute.xlu0 0
    %36 = vperm.xlu0 %35, %v31
    %v37 = vpop.permute.xlu0 %36
    %40 = vset.pattern.permute.xlu0 0
    %41 = vperm.xlu0 %40, %v32
    %v42 = vpop.permute.xlu0 %41
    %45 = vset.pattern.permute.xlu0 0
    %46 = vperm.xlu0 %45, %v33
    %v47 = vpop.permute.xlu0 %46
    %vm49 = vcmask 23552
    %v51 = vsel %vm49, %v28, 0
    %v54 = vsel %vm49, %v29, 0
    %v57 = vsel %vm49, %v30, 0
    %vm59 = vcmask 1042432
    %v61 = vsel %vm59, %v27, 0
    %63 = vmatprep.subr.mxu0 0.0
    %v64 = vand.u32 %v61, 4294901760
    %65 = vmatpush1.msra.mxu0 %v64
    %66 = vmatprep.subr.mxu0 0.0
    %67 = vmatpush1.msra.mxu0 0.0
    %68 = vmatprep.subr.mxu0 0.0
    %69 = vmatpush1.msra.mxu0 0.0
    %70 = vmatprep.subr.mxu0 0.0
    %71 = vmatpush1.msra.mxu0 0.0
    %72 = vmatprep.subr.mxu0 0.0
    %73 = vmatpush1.msra.mxu0 0.0
    %74 = vmatprep.subr.mxu0 0.0
    %75 = vmatpush1.msra.mxu0 0.0
    %76 = vmatprep.subr.mxu0 0.0
    %77 = vmatpush1.msra.mxu0 0.0
    %78 = vmatprep.subr.mxu0 0.0
    %79 = vmatpush1.msra.mxu0 0.0
    %80 = vmatprep.subr.mxu0 0.0
    %81 = vmatpush1.msra.mxu0 0.0
    %82 = vmatprep.subr.mxu0 0.0
    %83 = vmatpush1.msra.mxu0 0.0
    %84 = vmatprep.subr.mxu0 0.0
    %85 = vmatpush1.msra.mxu0 0.0
    %86 = vmatprep.subr.mxu0 0.0
    %87 = vmatpush1.msra.mxu0 0.0
    %88 = vmatprep.subr.mxu0 0.0
    %89 = vmatpush1.msra.mxu0 0.0
    %90 = vmatprep.subr.mxu0 0.0
    %91 = vmatpush1.msra.mxu0 0.0
    %92 = vmatprep.subr.mxu0 0.0
    %93 = vmatpush1.msra.mxu0 0.0
    %94 = vmatprep.subr.mxu0 0.0
    %95 = vmatpush1.msra.mxu0 0.0
    %96 = vmatprep.subr.mxu0 0.0
    %97 = vmatpush1.msra.mxu0 0.0
    %98 = vmatprep.subr.mxu0 0.0
    %99 = vmatpush1.msra.mxu0 0.0
    %100 = vmatprep.subr.mxu0 0.0
    %101 = vmatpush1.msra.mxu0 0.0
    %102 = vmatprep.subr.mxu0 0.0
    %103 = vmatpush1.msra.mxu0 0.0
    %104 = vmatprep.subr.mxu0 0.0
    %105 = vmatpush1.msra.mxu0 0.0
    %106 = vmatprep.subr.mxu0 0.0
    %107 = vmatpush1.msra.mxu0 0.0
    %108 = vmatprep.subr.mxu0 0.0
    %109 = vmatpush1.msra.mxu0 0.0
    %110 = vmatprep.subr.mxu0 0.0
    %111 = vmatpush1.msra.mxu0 0.0
    %112 = vmatprep.subr.mxu0 0.0
    %113 = vmatpush1.msra.mxu0 0.0
    %114 = vmatprep.subr.mxu0 0.0
    %115 = vmatpush1.msra.mxu0 0.0
    %116 = vmatprep.subr.mxu0 0.0
    %117 = vmatpush1.msra.mxu0 0.0
    %118 = vmatprep.subr.mxu0 0.0
    %119 = vmatpush1.msra.mxu0 0.0
    %120 = vmatprep.subr.mxu0 0.0
    %121 = vmatpush1.msra.mxu0 0.0
    %122 = vmatprep.subr.mxu0 0.0
    %123 = vmatpush1.msra.mxu0 0.0
    %124 = vmatprep.subr.mxu0 0.0
    %125 = vmatpush1.msra.mxu0 0.0
    %126 = vmatprep.subr.mxu0 0.0
    %127 = vmatpush1.msra.mxu0 0.0
    %128 = vmatprep.mubr.f32.mxu0 0.0
    %v129 = vand.u32 %v51, 4294901760
    %v130 = vsub.f32 %v51, %v129
    %v131 = vand.u32 %v130, 4294901760
    %v132 = vsub.f32 %v130, %v131
    %v133 = vand.u32 %v132, 4294901760
    %134 = vmatmul.mubr.f32.gmra.mrb[0].mxu0 %v133
    %v135 = vpop.f32.mrb[0].mxu0
    %v136 = vadd.f32 %v37, %v135
    %v137 = vpop.f32.mrb[0].mxu0
    %138 = vmatprep.mubr.f32.mxu0 0.0
    %v139 = vand.u32 %v54, 4294901760
    %v140 = vsub.f32 %v54, %v139
    %v141 = vand.u32 %v140, 4294901760
    %v142 = vsub.f32 %v140, %v141
    %v143 = vand.u32 %v142, 4294901760
    %144 = vmatmul.mubr.f32.gmra.mrb[0].mxu0 %v143
    %v145 = vpop.f32.mrb[0].mxu0
    %v146 = vadd.f32 %v42, %v145
    %v147 = vpop.f32.mrb[0].mxu0
    %148 = vmatprep.mubr.f32.mxu0 0.0
    %v149 = vand.u32 %v57, 4294901760
    %v150 = vsub.f32 %v57, %v149
    %v151 = vand.u32 %v150, 4294901760
    %v152 = vsub.f32 %v150, %v151
    %v153 = vand.u32 %v152, 4294901760
    %154 = vmatmul.mubr.f32.gmra.mrb[0].mxu0 %v153
    %v155 = vpop.f32.mrb[0].mxu0
    %v156 = vadd.f32 %v47, %v155
    %v157 = vpop.f32.mrb[0].mxu0
    %158 = vdwg.mxu0
    %159 = vmatprep.subr.mxu0 0.0
    %v160 = vand.u32 %v61, 4294901760
    %v161 = vsub.f32 %v61, %v160
    %v162 = vand.u32 %v161, 4294901760
    %v163 = vsub.f32 %v161, %v162
    %v164 = vand.u32 %v163, 4294901760
    %165 = vmatpush1.msra.mxu0 %v164
    %166 = vmatprep.subr.mxu0 0.0
    %167 = vmatpush1.msra.mxu0 0.0
    %168 = vmatprep.subr.mxu0 0.0
    %169 = vmatpush1.msra.mxu0 0.0
    %170 = vmatprep.subr.mxu0 0.0
    %171 = vmatpush1.msra.mxu0 0.0
    %172 = vmatprep.subr.mxu0 0.0
    %173 = vmatpush1.msra.mxu0 0.0
    %174 = vmatprep.subr.mxu0 0.0
    %175 = vmatpush1.msra.mxu0 0.0
    %176 = vmatprep.subr.mxu0 0.0
    %177 = vmatpush1.msra.mxu0 0.0
    %178 = vmatprep.subr.mxu0 0.0
    %179 = vmatpush1.msra.mxu0 0.0
    %180 = vmatprep.subr.mxu0 0.0
    %181 = vmatpush1.msra.mxu0 0.0
    %182 = vmatprep.subr.mxu0 0.0
    %183 = vmatpush1.msra.mxu0 0.0
    %184 = vmatprep.subr.mxu0 0.0
    %185 = vmatpush1.msra.mxu0 0.0
    %186 = vmatprep.subr.mxu0 0.0
    %187 = vmatpush1.msra.mxu0 0.0
    %188 = vmatprep.subr.mxu0 0.0
    %189 = vmatpush1.msra.mxu0 0.0
    %190 = vmatprep.subr.mxu0 0.0
    %191 = vmatpush1.msra.mxu0 0.0
    %192 = vmatprep.subr.mxu0 0.0
    %193 = vmatpush1.msra.mxu0 0.0
    %194 = vmatprep.subr.mxu0 0.0
    %195 = vmatpush1.msra.mxu0 0.0
    %196 = vmatprep.subr.mxu0 0.0
    %197 = vmatpush1.msra.mxu0 0.0
    %198 = vmatprep.subr.mxu0 0.0
    %199 = vmatpush1.msra.mxu0 0.0
    %200 = vmatprep.subr.mxu0 0.0
    %201 = vmatpush1.msra.mxu0 0.0
    %202 = vmatprep.subr.mxu0 0.0
    %203 = vmatpush1.msra.mxu0 0.0
    %204 = vmatprep.subr.mxu0 0.0
    %205 = vmatpush1.msra.mxu0 0.0
    %206 = vmatprep.subr.mxu0 0.0
    %207 = vmatpush1.msra.mxu0 0.0
    %208 = vmatprep.subr.mxu0 0.0
    %209 = vmatpush1.msra.mxu0 0.0
    %210 = vmatprep.subr.mxu0 0.0
    %211 = vmatpush1.msra.mxu0 0.0
    %212 = vmatprep.subr.mxu0 0.0
    %213 = vmatpush1.msra.mxu0 0.0
    %214 = vmatprep.subr.mxu0 0.0
    %215 = vmatpush1.msra.mxu0 0.0
    %216 = vmatprep.subr.mxu0 0.0
    %217 = vmatpush1.msra.mxu0 0.0
    %218 = vmatprep.subr.mxu0 0.0
    %219 = vmatpush1.msra.mxu0 0.0
    %220 = vmatprep.subr.mxu0 0.0
    %221 = vmatpush1.msra.mxu0 0.0
    %222 = vmatprep.subr.mxu0 0.0
    %223 = vmatpush1.msra.mxu0 0.0
    %224 = vmatprep.subr.mxu0 0.0
    %225 = vmatpush1.msra.mxu0 0.0
    %226 = vmatprep.subr.mxu0 0.0
    %227 = vmatpush1.msra.mxu0 0.0
    %228 = vmatprep.mubr.f32.mxu0 0.0
    %v229 = vand.u32 %v51, 4294901760
    %230 = vmatmul.mubr.f32.gmra.mrb[0].mxu0 %v229
    %v231 = vpop.f32.mrb[0].mxu0
    %v232 = vadd.f32 %v136, %v231
    %v233 = vpop.f32.mrb[0].mxu0
    %234 = vmatprep.mubr.f32.mxu0 0.0
    %v235 = vand.u32 %v54, 4294901760
    %236 = vmatmul.mubr.f32.gmra.mrb[0].mxu0 %v235
    %v237 = vpop.f32.mrb[0].mxu0
    %v238 = vadd.f32 %v146, %v237
    %v239 = vpop.f32.mrb[0].mxu0
    %240 = vmatprep.mubr.f32.mxu0 0.0
    %v241 = vand.u32 %v57, 4294901760
    %242 = vmatmul.mubr.f32.gmra.mrb[0].mxu0 %v241
    %v243 = vpop.f32.mrb[0].mxu0
    %v244 = vadd.f32 %v156, %v243
    %v245 = vpop.f32.mrb[0].mxu0
    %246 = vdwg.mxu0
    %247 = vmatprep.subr.mxu0 0.0
    %v248 = vand.u32 %v61, 4294901760
    %v249 = vsub.f32 %v61, %v248
    %250 = vmatpush1.msra.mxu0 %v249
    %251 = vmatprep.subr.mxu0 0.0
    %252 = vmatpush1.msra.mxu0 0.0
    %253 = vmatprep.subr.mxu0 0.0
    %254 = vmatpush1.msra.mxu0 0.0
    %255 = vmatprep.subr.mxu0 0.0
    %256 = vmatpush1.msra.mxu0 0.0
    %257 = vmatprep.subr.mxu0 0.0
    %258 = vmatpush1.msra.mxu0 0.0
    %259 = vmatprep.subr.mxu0 0.0
    %260 = vmatpush1.msra.mxu0 0.0
    %261 = vmatprep.subr.mxu0 0.0
    %262 = vmatpush1.msra.mxu0 0.0
    %263 = vmatprep.subr.mxu0 0.0
    %264 = vmatpush1.msra.mxu0 0.0
    %265 = vmatprep.subr.mxu0 0.0
    %266 = vmatpush1.msra.mxu0 0.0
    %267 = vmatprep.subr.mxu0 0.0
    %268 = vmatpush1.msra.mxu0 0.0
    %269 = vmatprep.subr.mxu0 0.0
    %270 = vmatpush1.msra.mxu0 0.0
    %271 = vmatprep.subr.mxu0 0.0
    %272 = vmatpush1.msra.mxu0 0.0
    %273 = vmatprep.subr.mxu0 0.0
    %274 = vmatpush1.msra.mxu0 0.0
    %275 = vmatprep.subr.mxu0 0.0
    %276 = vmatpush1.msra.mxu0 0.0
    %277 = vmatprep.subr.mxu0 0.0
    %278 = vmatpush1.msra.mxu0 0.0
    %279 = vmatprep.subr.mxu0 0.0
    %280 = vmatpush1.msra.mxu0 0.0
    %281 = vmatprep.subr.mxu0 0.0
    %282 = vmatpush1.msra.mxu0 0.0
    %283 = vmatprep.subr.mxu0 0.0
    %284 = vmatpush1.msra.mxu0 0.0
    %285 = vmatprep.subr.mxu0 0.0
    %286 = vmatpush1.msra.mxu0 0.0
    %287 = vmatprep.subr.mxu0 0.0
    %288 = vmatpush1.msra.mxu0 0.0
    %289 = vmatprep.subr.mxu0 0.0
    %290 = vmatpush1.msra.mxu0 0.0
    %291 = vmatprep.subr.mxu0 0.0
    %292 = vmatpush1.msra.mxu0 0.0
    %293 = vmatprep.subr.mxu0 0.0
    %294 = vmatpush1.msra.mxu0 0.0
    %295 = vmatprep.subr.mxu0 0.0
    %296 = vmatpush1.msra.mxu0 0.0
    %297 = vmatprep.subr.mxu0 0.0
    %298 = vmatpush1.msra.mxu0 0.0
    %299 = vmatprep.subr.mxu0 0.0
    %300 = vmatpush1.msra.mxu0 0.0
    %301 = vmatprep.subr.mxu0 0.0
    %302 = vmatpush1.msra.mxu0 0.0
    %303 = vmatprep.subr.mxu0 0.0
    %304 = vmatpush1.msra.mxu0 0.0
    %305 = vmatprep.subr.mxu0 0.0
    %306 = vmatpush1.msra.mxu0 0.0
    %307 = vmatprep.subr.mxu0 0.0
    %308 = vmatpush1.msra.mxu0 0.0
    %309 = vmatprep.subr.mxu0 0.0
    %310 = vmatpush1.msra.mxu0 0.0
    %311 = vmatprep.subr.mxu0 0.0
    %312 = vmatpush1.msra.mxu0 0.0
    %313 = vmatprep.mubr.f32.mxu0 0.0
    %v314 = vand.u32 %v51, 4294901760
    %v315 = vsub.f32 %v51, %v314
    %316 = vmatmul.mubr.f32.gmra.mrb[0].mxu0 %v315
    %v317 = vpop.f32.mrb[0].mxu0
    %v318 = vadd.f32 %v232, %v317
    %v319 = vpop.f32.mrb[0].mxu0
    %320 = vmatprep.mubr.f32.mxu0 0.0
    %v321 = vand.u32 %v54, 4294901760
    %v322 = vsub.f32 %v54, %v321
    %323 = vmatmul.mubr.f32.gmra.mrb[0].mxu0 %v322
    %v324 = vpop.f32.mrb[0].mxu0
    %v325 = vadd.f32 %v238, %v324
    %v326 = vpop.f32.mrb[0].mxu0
    %327 = vmatprep.mubr.f32.mxu0 0.0
    %v328 = vand.u32 %v57, 4294901760
    %v329 = vsub.f32 %v57, %v328
    %330 = vmatmul.mubr.f32.gmra.mrb[0].mxu0 %v329
    %v331 = vpop.f32.mrb[0].mxu0
    %v332 = vadd.f32 %v244, %v331
    %v333 = vpop.f32.mrb[0].mxu0
    %334 = vdwg.mxu0
    %335 = vmatprep.subr.mxu0 0.0
    %v336 = vand.u32 %v61, 4294901760
    %337 = vmatpush1.msra.mxu0 %v336
    %338 = vmatprep.subr.mxu0 0.0
    %339 = vmatpush1.msra.mxu0 0.0
    %340 = vmatprep.subr.mxu0 0.0
    %341 = vmatpush1.msra.mxu0 0.0
    %342 = vmatprep.subr.mxu0 0.0
    %343 = vmatpush1.msra.mxu0 0.0
    %344 = vmatprep.subr.mxu0 0.0
    %345 = vmatpush1.msra.mxu0 0.0
    %346 = vmatprep.subr.mxu0 0.0
    %347 = vmatpush1.msra.mxu0 0.0
    %348 = vmatprep.subr.mxu0 0.0
    %349 = vmatpush1.msra.mxu0 0.0
    %350 = vmatprep.subr.mxu0 0.0
    %351 = vmatpush1.msra.mxu0 0.0
    %352 = vmatprep.subr.mxu0 0.0
    %353 = vmatpush1.msra.mxu0 0.0
    %354 = vmatprep.subr.mxu0 0.0
    %355 = vmatpush1.msra.mxu0 0.0
    %356 = vmatprep.subr.mxu0 0.0
    %357 = vmatpush1.msra.mxu0 0.0
    %358 = vmatprep.subr.mxu0 0.0
    %359 = vmatpush1.msra.mxu0 0.0
    %360 = vmatprep.subr.mxu0 0.0
    %361 = vmatpush1.msra.mxu0 0.0
    %362 = vmatprep.subr.mxu0 0.0
    %363 = vmatpush1.msra.mxu0 0.0
    %364 = vmatprep.subr.mxu0 0.0
    %365 = vmatpush1.msra.mxu0 0.0
    %366 = vmatprep.subr.mxu0 0.0
    %367 = vmatpush1.msra.mxu0 0.0
    %368 = vmatprep.subr.mxu0 0.0
    %369 = vmatpush1.msra.mxu0 0.0
    %370 = vmatprep.subr.mxu0 0.0
    %371 = vmatpush1.msra.mxu0 0.0
    %372 = vmatprep.subr.mxu0 0.0
    %373 = vmatpush1.msra.mxu0 0.0
    %374 = vmatprep.subr.mxu0 0.0
    %375 = vmatpush1.msra.mxu0 0.0
    %376 = vmatprep.subr.mxu0 0.0
    %377 = vmatpush1.msra.mxu0 0.0
    %378 = vmatprep.subr.mxu0 0.0
    %379 = vmatpush1.msra.mxu0 0.0
    %380 = vmatprep.subr.mxu0 0.0
    %381 = vmatpush1.msra.mxu0 0.0
    %382 = vmatprep.subr.mxu0 0.0
    %383 = vmatpush1.msra.mxu0 0.0
    %384 = vmatprep.subr.mxu0 0.0
    %385 = vmatpush1.msra.mxu0 0.0
    %386 = vmatprep.subr.mxu0 0.0
    %387 = vmatpush1.msra.mxu0 0.0
    %388 = vmatprep.subr.mxu0 0.0
    %389 = vmatpush1.msra.mxu0 0.0
    %390 = vmatprep.subr.mxu0 0.0
    %391 = vmatpush1.msra.mxu0 0.0
    %392 = vmatprep.subr.mxu0 0.0
    %393 = vmatpush1.msra.mxu0 0.0
    %394 = vmatprep.subr.mxu0 0.0
    %395 = vmatpush1.msra.mxu0 0.0
    %396 = vmatprep.subr.mxu0 0.0
    %397 = vmatpush1.msra.mxu0 0.0
    %398 = vmatprep.subr.mxu0 0.0
    %399 = vmatpush1.msra.mxu0 0.0
    %400 = vmatprep.mubr.f32.mxu0 0.0
    %v401 = vand.u32 %v51, 4294901760
    %v402 = vsub.f32 %v51, %v401
    %v403 = vand.u32 %v402, 4294901760
    %404 = vmatmul.mubr.f32.gmra.mrb[0].mxu0 %v403
    %v405 = vpop.f32.mrb[0].mxu0
    %v406 = vadd.f32 %v318, %v405
    %v407 = vpop.f32.mrb[0].mxu0
    %408 = vmatprep.mubr.f32.mxu0 0.0
    %v409 = vand.u32 %v54, 4294901760
    %v410 = vsub.f32 %v54, %v409
    %v411 = vand.u32 %v410, 4294901760
    %412 = vmatmul.mubr.f32.gmra.mrb[0].mxu0 %v411
    %v413 = vpop.f32.mrb[0].mxu0
    %v414 = vadd.f32 %v325, %v413
    %v415 = vpop.f32.mrb[0].mxu0
    %416 = vmatprep.mubr.f32.mxu0 0.0
    %v417 = vand.u32 %v57, 4294901760
    %v418 = vsub.f32 %v57, %v417
    %v419 = vand.u32 %v418, 4294901760
    %420 = vmatmul.mubr.f32.gmra.mrb[0].mxu0 %v419
    %v421 = vpop.f32.mrb[0].mxu0
    %v422 = vadd.f32 %v332, %v421
    %v423 = vpop.f32.mrb[0].mxu0
    %424 = vdwg.mxu0
    %425 = vmatprep.subr.mxu0 0.0
    %v426 = vand.u32 %v61, 4294901760
    %v427 = vsub.f32 %v61, %v426
    %v428 = vand.u32 %v427, 4294901760
    %429 = vmatpush1.msra.mxu0 %v428
    %430 = vmatprep.subr.mxu0 0.0
    %431 = vmatpush1.msra.mxu0 0.0
    %432 = vmatprep.subr.mxu0 0.0
    %433 = vmatpush1.msra.mxu0 0.0
    %434 = vmatprep.subr.mxu0 0.0
    %435 = vmatpush1.msra.mxu0 0.0
    %436 = vmatprep.subr.mxu0 0.0
    %437 = vmatpush1.msra.mxu0 0.0
    %438 = vmatprep.subr.mxu0 0.0
    %439 = vmatpush1.msra.mxu0 0.0
    %440 = vmatprep.subr.mxu0 0.0
    %441 = vmatpush1.msra.mxu0 0.0
    %442 = vmatprep.subr.mxu0 0.0
    %443 = vmatpush1.msra.mxu0 0.0
    %444 = vmatprep.subr.mxu0 0.0
    %445 = vmatpush1.msra.mxu0 0.0
    %446 = vmatprep.subr.mxu0 0.0
    %447 = vmatpush1.msra.mxu0 0.0
    %448 = vmatprep.subr.mxu0 0.0
    %449 = vmatpush1.msra.mxu0 0.0
    %450 = vmatprep.subr.mxu0 0.0
    %451 = vmatpush1.msra.mxu0 0.0
    %452 = vmatprep.subr.mxu0 0.0
    %453 = vmatpush1.msra.mxu0 0.0
    %454 = vmatprep.subr.mxu0 0.0
    %455 = vmatpush1.msra.mxu0 0.0
    %456 = vmatprep.subr.mxu0 0.0
    %457 = vmatpush1.msra.mxu0 0.0
    %458 = vmatprep.subr.mxu0 0.0
    %459 = vmatpush1.msra.mxu0 0.0
    %460 = vmatprep.subr.mxu0 0.0
    %461 = vmatpush1.msra.mxu0 0.0
    %462 = vmatprep.subr.mxu0 0.0
    %463 = vmatpush1.msra.mxu0 0.0
    %464 = vmatprep.subr.mxu0 0.0
    %465 = vmatpush1.msra.mxu0 0.0
    %466 = vmatprep.subr.mxu0 0.0
    %467 = vmatpush1.msra.mxu0 0.0
    %468 = vmatprep.subr.mxu0 0.0
    %469 = vmatpush1.msra.mxu0 0.0
    %470 = vmatprep.subr.mxu0 0.0
    %471 = vmatpush1.msra.mxu0 0.0
    %472 = vmatprep.subr.mxu0 0.0
    %473 = vmatpush1.msra.mxu0 0.0
    %474 = vmatprep.subr.mxu0 0.0
    %475 = vmatpush1.msra.mxu0 0.0
    %476 = vmatprep.subr.mxu0 0.0
    %477 = vmatpush1.msra.mxu0 0.0
    %478 = vmatprep.subr.mxu0 0.0
    %479 = vmatpush1.msra.mxu0 0.0
    %480 = vmatprep.subr.mxu0 0.0
    %481 = vmatpush1.msra.mxu0 0.0
    %482 = vmatprep.subr.mxu0 0.0
    %483 = vmatpush1.msra.mxu0 0.0
    %484 = vmatprep.subr.mxu0 0.0
    %485 = vmatpush1.msra.mxu0 0.0
    %486 = vmatprep.subr.mxu0 0.0
    %487 = vmatpush1.msra.mxu0 0.0
    %488 = vmatprep.subr.mxu0 0.0
    %489 = vmatpush1.msra.mxu0 0.0
    %490 = vmatprep.subr.mxu0 0.0
    %491 = vmatpush1.msra.mxu0 0.0
    %492 = vmatprep.mubr.f32.mxu0 0.0
    %v493 = vand.u32 %v51, 4294901760
    %494 = vmatmul.mubr.f32.gmra.mrb[0].mxu0 %v493
    %v495 = vpop.f32.mrb[0].mxu0
    %v496 = vadd.f32 %v406, %v495
    %v497 = vpop.f32.mrb[0].mxu0
    %498 = vmatprep.mubr.f32.mxu0 0.0
    %v499 = vand.u32 %v54, 4294901760
    %500 = vmatmul.mubr.f32.gmra.mrb[0].mxu0 %v499
    %v501 = vpop.f32.mrb[0].mxu0
    %v502 = vadd.f32 %v414, %v501
    %v503 = vpop.f32.mrb[0].mxu0
    %504 = vmatprep.mubr.f32.mxu0 0.0
    %v505 = vand.u32 %v57, 4294901760
    %506 = vmatmul.mubr.f32.gmra.mrb[0].mxu0 %v505
    %v507 = vpop.f32.mrb[0].mxu0
    %v508 = vadd.f32 %v422, %v507
    %v509 = vpop.f32.mrb[0].mxu0
    %510 = vdwg.mxu0
    %511 = vmatprep.subr.mxu0 0.0
    %v512 = vand.u32 %v61, 4294901760
    %513 = vmatpush1.msra.mxu0 %v512
    %514 = vmatprep.subr.mxu0 0.0
    %515 = vmatpush1.msra.mxu0 0.0
    %516 = vmatprep.subr.mxu0 0.0
    %517 = vmatpush1.msra.mxu0 0.0
    %518 = vmatprep.subr.mxu0 0.0
    %519 = vmatpush1.msra.mxu0 0.0
    %520 = vmatprep.subr.mxu0 0.0
    %521 = vmatpush1.msra.mxu0 0.0
    %522 = vmatprep.subr.mxu0 0.0
    %523 = vmatpush1.msra.mxu0 0.0
    %524 = vmatprep.subr.mxu0 0.0
    %525 = vmatpush1.msra.mxu0 0.0
    %526 = vmatprep.subr.mxu0 0.0
    %527 = vmatpush1.msra.mxu0 0.0
    %528 = vmatprep.subr.mxu0 0.0
    %529 = vmatpush1.msra.mxu0 0.0
    %530 = vmatprep.subr.mxu0 0.0
    %531 = vmatpush1.msra.mxu0 0.0
    %532 = vmatprep.subr.mxu0 0.0
    %533 = vmatpush1.msra.mxu0 0.0
    %534 = vmatprep.subr.mxu0 0.0
    %535 = vmatpush1.msra.mxu0 0.0
    %536 = vmatprep.subr.mxu0 0.0
    %537 = vmatpush1.msra.mxu0 0.0
    %538 = vmatprep.subr.mxu0 0.0
    %539 = vmatpush1.msra.mxu0 0.0
    %540 = vmatprep.subr.mxu0 0.0
    %541 = vmatpush1.msra.mxu0 0.0
    %542 = vmatprep.subr.mxu0 0.0
    %543 = vmatpush1.msra.mxu0 0.0
    %544 = vmatprep.subr.mxu0 0.0
    %545 = vmatpush1.msra.mxu0 0.0
    %546 = vmatprep.subr.mxu0 0.0
    %547 = vmatpush1.msra.mxu0 0.0
    %548 = vmatprep.subr.mxu0 0.0
    %549 = vmatpush1.msra.mxu0 0.0
    %550 = vmatprep.subr.mxu0 0.0
    %551 = vmatpush1.msra.mxu0 0.0
    %552 = vmatprep.subr.mxu0 0.0
    %553 = vmatpush1.msra.mxu0 0.0
    %554 = vmatprep.subr.mxu0 0.0
    %555 = vmatpush1.msra.mxu0 0.0
    %556 = vmatprep.subr.mxu0 0.0
    %557 = vmatpush1.msra.mxu0 0.0
    %558 = vmatprep.subr.mxu0 0.0
    %559 = vmatpush1.msra.mxu0 0.0
    %560 = vmatprep.subr.mxu0 0.0
    %561 = vmatpush1.msra.mxu0 0.0
    %562 = vmatprep.subr.mxu0 0.0
    %563 = vmatpush1.msra.mxu0 0.0
    %564 = vmatprep.subr.mxu0 0.0
    %565 = vmatpush1.msra.mxu0 0.0
    %566 = vmatprep.subr.mxu0 0.0
    %567 = vmatpush1.msra.mxu0 0.0
    %568 = vmatprep.subr.mxu0 0.0
    %569 = vmatpush1.msra.mxu0 0.0
    %570 = vmatprep.subr.mxu0 0.0
    %571 = vmatpush1.msra.mxu0 0.0
    %572 = vmatprep.subr.mxu0 0.0
    %573 = vmatpush1.msra.mxu0 0.0
    %574 = vmatprep.subr.mxu0 0.0
    %575 = vmatpush1.msra.mxu0 0.0
    %576 = vmatprep.mubr.f32.mxu0 0.0
    %v577 = vand.u32 %v51, 4294901760
    %578 = vmatmul.mubr.f32.gmra.mrb[0].mxu0 %v577
    %v579 = vpop.f32.mrb[0].mxu0
    %v580 = vadd.f32 %v496, %v579
    %v581 = vpop.f32.mrb[0].mxu0
    %582 = vmatprep.mubr.f32.mxu0 0.0
    %v583 = vand.u32 %v54, 4294901760
    %584 = vmatmul.mubr.f32.gmra.mrb[0].mxu0 %v583
    %v585 = vpop.f32.mrb[0].mxu0
    %v586 = vadd.f32 %v502, %v585
    %v587 = vpop.f32.mrb[0].mxu0
    %588 = vmatprep.mubr.f32.mxu0 0.0
    %v589 = vand.u32 %v57, 4294901760
    %590 = vmatmul.mubr.f32.gmra.mrb[0].mxu0 %v589
    %v591 = vpop.f32.mrb[0].mxu0
    %v592 = vadd.f32 %v508, %v591
    %v593 = vpop.f32.mrb[0].mxu0
    %594 = vdwg.mxu0
    %v595 = vmax.f32 %v580, 0.0
    %v596 = vmax.f32 %v586, 0.0
    %v597 = vmax.f32 %v592, 0.0
    %v598 = vld [vmem:[%s3] sm:$0xff]
    %v599 = vld [vmem:[%s3 + $0x8] sm:$0xff]
    %v600 = vld [vmem:[%s3 + $0x10] sm:$0xff]
    %v601 = vld [vmem:[%s4] sm:$0xff]
    %v602 = vld [vmem:[%s4 + $0x8] sm:$0xff]
    %v603 = vld [vmem:[%s4 + $0x10] sm:$0xff]
    %605 = vset.pattern.permute.xlu0 0
    %606 = vperm.xlu0 %605, %v601
    %v607 = vpop.permute.xlu0 %606
    %610 = vset.pattern.permute.xlu0 0
    %611 = vperm.xlu0 %610, %v602
    %v612 = vpop.permute.xlu0 %611
    %615 = vset.pattern.permute.xlu0 0
    %616 = vperm.xlu0 %615, %v603
    %v617 = vpop.permute.xlu0 %616
    %vm619 = vcmask 195584
    %v621 = vsel %vm619, %v598, 0
    %v624 = vsel %vm619, %v599, 0
    %v627 = vsel %vm619, %v600, 0
    %629 = vmatprep.subr.mxu0 0.0
    %v630 = vand.u32 %v595, 4294901760
    %631 = vmatpush1.msra.mxu0 %v630
    %632 = vmatprep.subr.mxu0 0.0
    %v633 = vand.u32 %v596, 4294901760
    %634 = vmatpush1.msra.mxu0 %v633
    %635 = vmatprep.subr.mxu0 0.0
    %v636 = vand.u32 %v597, 4294901760
    %637 = vmatpush1.msra.mxu0 %v636
    %638 = vmatprep.subr.mxu0 0.0
    %639 = vmatpush1.msra.mxu0 0.0
    %640 = vmatprep.subr.mxu0 0.0
    %641 = vmatpush1.msra.mxu0 0.0
    %642 = vmatprep.subr.mxu0 0.0
    %643 = vmatpush1.msra.mxu0 0.0
    %644 = vmatprep.subr.mxu0 0.0
    %645 = vmatpush1.msra.mxu0 0.0
    %646 = vmatprep.subr.mxu0 0.0
    %647 = vmatpush1.msra.mxu0 0.0
    %648 = vmatprep.subr.mxu0 0.0
    %649 = vmatpush1.msra.mxu0 0.0
    %650 = vmatprep.subr.mxu0 0.0
    %651 = vmatpush1.msra.mxu0 0.0
    %652 = vmatprep.subr.mxu0 0.0
    %653 = vmatpush1.msra.mxu0 0.0
    %654 = vmatprep.subr.mxu0 0.0
    %655 = vmatpush1.msra.mxu0 0.0
    %656 = vmatprep.subr.mxu0 0.0
    %657 = vmatpush1.msra.mxu0 0.0
    %658 = vmatprep.subr.mxu0 0.0
    %659 = vmatpush1.msra.mxu0 0.0
    %660 = vmatprep.subr.mxu0 0.0
    %661 = vmatpush1.msra.mxu0 0.0
    %662 = vmatprep.subr.mxu0 0.0
    %663 = vmatpush1.msra.mxu0 0.0
    %664 = vmatprep.subr.mxu0 0.0
    %665 = vmatpush1.msra.mxu0 0.0
    %666 = vmatprep.subr.mxu0 0.0
    %667 = vmatpush1.msra.mxu0 0.0
    %668 = vmatprep.subr.mxu0 0.0
    %669 = vmatpush1.msra.mxu0 0.0
    %670 = vmatprep.subr.mxu0 0.0
    %671 = vmatpush1.msra.mxu0 0.0
    %672 = vmatprep.subr.mxu0 0.0
    %673 = vmatpush1.msra.mxu0 0.0
    %674 = vmatprep.subr.mxu0 0.0
    %675 = vmatpush1.msra.mxu0 0.0
    %676 = vmatprep.subr.mxu0 0.0
    %677 = vmatpush1.msra.mxu0 0.0
    %678 = vmatprep.subr.mxu0 0.0
    %679 = vmatpush1.msra.mxu0 0.0
    %680 = vmatprep.subr.mxu0 0.0
    %681 = vmatpush1.msra.mxu0 0.0
    %682 = vmatprep.subr.mxu0 0.0
    %683 = vmatpush1.msra.mxu0 0.0
    %684 = vmatprep.subr.mxu0 0.0
    %685 = vmatpush1.msra.mxu0 0.0
    %686 = vmatprep.subr.mxu0 0.0
    %687 = vmatpush1.msra.mxu0 0.0
    %688 = vmatprep.subr.mxu0 0.0
    %689 = vmatpush1.msra.mxu0 0.0
    %690 = vmatprep.subr.mxu0 0.0
    %691 = vmatpush1.msra.mxu0 0.0
    %692 = vmatprep.subr.mxu0 0.0
    %693 = vmatpush1.msra.mxu0 0.0
    %694 = vmatprep.subr.mxu0 0.0
    %695 = vmatpush1.msra.mxu0 0.0
    %696 = vmatprep.mubr.f32.mxu0 0.0
    %v697 = vand.u32 %v621, 4294901760
    %v698 = vsub.f32 %v621, %v697
    %v699 = vand.u32 %v698, 4294901760
    %v700 = vsub.f32 %v698, %v699
    %v701 = vand.u32 %v700, 4294901760
    %702 = vmatmul.mubr.f32.gmra.mrb[0].mxu0 %v701
    %v703 = vpop.f32.mrb[0].mxu0
    %v704 = vadd.f32 %v607, %v703
    %v705 = vpop.f32.mrb[0].mxu0
    %706 = vmatprep.mubr.f32.mxu0 0.0
    %v707 = vand.u32 %v624, 4294901760
    %v708 = vsub.f32 %v624, %v707
    %v709 = vand.u32 %v708, 4294901760
    %v710 = vsub.f32 %v708, %v709
    %v711 = vand.u32 %v710, 4294901760
    %712 = vmatmul.mubr.f32.gmra.mrb[0].mxu0 %v711
    %v713 = vpop.f32.mrb[0].mxu0
    %v714 = vadd.f32 %v612, %v713
    %v715 = vpop.f32.mrb[0].mxu0
    %716 = vmatprep.mubr.f32.mxu0 0.0
    %v717 = vand.u32 %v627, 4294901760
    %v718 = vsub.f32 %v627, %v717
    %v719 = vand.u32 %v718, 4294901760
    %v720 = vsub.f32 %v718, %v719
    %v721 = vand.u32 %v720, 4294901760
    %722 = vmatmul.mubr.f32.gmra.mrb[0].mxu0 %v721
    %v723 = vpop.f32.mrb[0].mxu0
    %v724 = vadd.f32 %v617, %v723
    %v725 = vpop.f32.mrb[0].mxu0
    %726 = vdwg.mxu0
    %727 = vmatprep.subr.mxu0 0.0
    %v728 = vand.u32 %v595, 4294901760
    %v729 = vsub.f32 %v595, %v728
    %v730 = vand.u32 %v729, 4294901760
    %v731 = vsub.f32 %v729, %v730
    %v732 = vand.u32 %v731, 4294901760
    %733 = vmatpush1.msra.mxu0 %v732
    %734 = vmatprep.subr.mxu0 0.0
    %v735 = vand.u32 %v596, 4294901760
    %v736 = vsub.f32 %v596, %v735
    %v737 = vand.u32 %v736, 4294901760
    %v738 = vsub.f32 %v736, %v737
    %v739 = vand.u32 %v738, 4294901760
    %740 = vmatpush1.msra.mxu0 %v739
    %741 = vmatprep.subr.mxu0 0.0
    %v742 = vand.u32 %v597, 4294901760
    %v743 = vsub.f32 %v597, %v742
    %v744 = vand.u32 %v743, 4294901760
    %v745 = vsub.f32 %v743, %v744
    %v746 = vand.u32 %v745, 4294901760
    %747 = vmatpush1.msra.mxu0 %v746
    %748 = vmatprep.subr.mxu0 0.0
    %749 = vmatpush1.msra.mxu0 0.0
    %750 = vmatprep.subr.mxu0 0.0
    %751 = vmatpush1.msra.mxu0 0.0
    %752 = vmatprep.subr.mxu0 0.0
    %753 = vmatpush1.msra.mxu0 0.0
    %754 = vmatprep.subr.mxu0 0.0
    %755 = vmatpush1.msra.mxu0 0.0
    %756 = vmatprep.subr.mxu0 0.0
    %757 = vmatpush1.msra.mxu0 0.0
    %758 = vmatprep.subr.mxu0 0.0
    %759 = vmatpush1.msra.mxu0 0.0
    %760 = vmatprep.subr.mxu0 0.0
    %761 = vmatpush1.msra.mxu0 0.0
    %762 = vmatprep.subr.mxu0 0.0
    %763 = vmatpush1.msra.mxu0 0.0
    %764 = vmatprep.subr.mxu0 0.0
    %765 = vmatpush1.msra.mxu0 0.0
    %766 = vmatprep.subr.mxu0 0.0
    %767 = vmatpush1.msra.mxu0 0.0
    %768 = vmatprep.subr.mxu0 0.0
    %769 = vmatpush1.msra.mxu0 0.0
    %770 = vmatprep.subr.mxu0 0.0
    %771 = vmatpush1.msra.mxu0 0.0
    %772 = vmatprep.subr.mxu0 0.0
    %773 = vmatpush1.msra.mxu0 0.0
    %774 = vmatprep.subr.mxu0 0.0
    %775 = vmatpush1.msra.mxu0 0.0
    %776 = vmatprep.subr.mxu0 0.0
    %777 = vmatpush1.msra.mxu0 0.0
    %778 = vmatprep.subr.mxu0 0.0
    %779 = vmatpush1.msra.mxu0 0.0
    %780 = vmatprep.subr.mxu0 0.0
    %781 = vmatpush1.msra.mxu0 0.0
    %782 = vmatprep.subr.mxu0 0.0
    %783 = vmatpush1.msra.mxu0 0.0
    %784 = vmatprep.subr.mxu0 0.0
    %785 = vmatpush1.msra.mxu0 0.0
    %786 = vmatprep.subr.mxu0 0.0
    %787 = vmatpush1.msra.mxu0 0.0
    %788 = vmatprep.subr.mxu0 0.0
    %789 = vmatpush1.msra.mxu0 0.0
    %790 = vmatprep.subr.mxu0 0.0
    %791 = vmatpush1.msra.mxu0 0.0
    %792 = vmatprep.subr.mxu0 0.0
    %793 = vmatpush1.msra.mxu0 0.0
    %794 = vmatprep.subr.mxu0 0.0
    %795 = vmatpush1.msra.mxu0 0.0
    %796 = vmatprep.subr.mxu0 0.0
    %797 = vmatpush1.msra.mxu0 0.0
    %798 = vmatprep.subr.mxu0 0.0
    %799 = vmatpush1.msra.mxu0 0.0
    %800 = vmatprep.subr.mxu0 0.0
    %801 = vmatpush1.msra.mxu0 0.0
    %802 = vmatprep.subr.mxu0 0.0
    %803 = vmatpush1.msra.mxu0 0.0
    %804 = vmatprep.subr.mxu0 0.0
    %805 = vmatpush1.msra.mxu0 0.0
    %806 = vmatprep.mubr.f32.mxu0 0.0
    %v807 = vand.u32 %v621, 4294901760
    %808 = vmatmul.mubr.f32.gmra.mrb[0].mxu0 %v807
    %v809 = vpop.f32.mrb[0].mxu0
    %v810 = vadd.f32 %v704, %v809
    %v811 = vpop.f32.mrb[0].mxu0
    %812 = vmatprep.mubr.f32.mxu0 0.0
    %v813 = vand.u32 %v624, 4294901760
    %814 = vmatmul.mubr.f32.gmra.mrb[0].mxu0 %v813
    %v815 = vpop.f32.mrb[0].mxu0
    %v816 = vadd.f32 %v714, %v815
    %v817 = vpop.f32.mrb[0].mxu0
    %818 = vmatprep.mubr.f32.mxu0 0.0
    %v819 = vand.u32 %v627, 4294901760
    %820 = vmatmul.mubr.f32.gmra.mrb[0].mxu0 %v819
    %v821 = vpop.f32.mrb[0].mxu0
    %v822 = vadd.f32 %v724, %v821
    %v823 = vpop.f32.mrb[0].mxu0
    %824 = vdwg.mxu0
    %825 = vmatprep.subr.mxu0 0.0
    %v826 = vand.u32 %v595, 4294901760
    %v827 = vsub.f32 %v595, %v826
    %828 = vmatpush1.msra.mxu0 %v827
    %829 = vmatprep.subr.mxu0 0.0
    %v830 = vand.u32 %v596, 4294901760
    %v831 = vsub.f32 %v596, %v830
    %832 = vmatpush1.msra.mxu0 %v831
    %833 = vmatprep.subr.mxu0 0.0
    %v834 = vand.u32 %v597, 4294901760
    %v835 = vsub.f32 %v597, %v834
    %836 = vmatpush1.msra.mxu0 %v835
    %837 = vmatprep.subr.mxu0 0.0
    %838 = vmatpush1.msra.mxu0 0.0
    %839 = vmatprep.subr.mxu0 0.0
    %840 = vmatpush1.msra.mxu0 0.0
    %841 = vmatprep.subr.mxu0 0.0
    %842 = vmatpush1.msra.mxu0 0.0
    %843 = vmatprep.subr.mxu0 0.0
    %844 = vmatpush1.msra.mxu0 0.0
    %845 = vmatprep.subr.mxu0 0.0
    %846 = vmatpush1.msra.mxu0 0.0
    %847 = vmatprep.subr.mxu0 0.0
    %848 = vmatpush1.msra.mxu0 0.0
    %849 = vmatprep.subr.mxu0 0.0
    %850 = vmatpush1.msra.mxu0 0.0
    %851 = vmatprep.subr.mxu0 0.0
    %852 = vmatpush1.msra.mxu0 0.0
    %853 = vmatprep.subr.mxu0 0.0
    %854 = vmatpush1.msra.mxu0 0.0
    %855 = vmatprep.subr.mxu0 0.0
    %856 = vmatpush1.msra.mxu0 0.0
    %857 = vmatprep.subr.mxu0 0.0
    %858 = vmatpush1.msra.mxu0 0.0
    %859 = vmatprep.subr.mxu0 0.0
    %860 = vmatpush1.msra.mxu0 0.0
    %861 = vmatprep.subr.mxu0 0.0
    %862 = vmatpush1.msra.mxu0 0.0
    %863 = vmatprep.subr.mxu0 0.0
    %864 = vmatpush1.msra.mxu0 0.0
    %865 = vmatprep.subr.mxu0 0.0
    %866 = vmatpush1.msra.mxu0 0.0
    %867 = vmatprep.subr.mxu0 0.0
    %868 = vmatpush1.msra.mxu0 0.0
    %869 = vmatprep.subr.mxu0 0.0
    %870 = vmatpush1.msra.mxu0 0.0
    %871 = vmatprep.subr.mxu0 0.0
    %872 = vmatpush1.msra.mxu0 0.0
    %873 = vmatprep.subr.mxu0 0.0
    %874 = vmatpush1.msra.mxu0 0.0
    %875 = vmatprep.subr.mxu0 0.0
    %876 = vmatpush1.msra.mxu0 0.0
    %877 = vmatprep.subr.mxu0 0.0
    %878 = vmatpush1.msra.mxu0 0.0
    %879 = vmatprep.subr.mxu0 0.0
    %880 = vmatpush1.msra.mxu0 0.0
    %881 = vmatprep.subr.mxu0 0.0
    %882 = vmatpush1.msra.mxu0 0.0
    %883 = vmatprep.subr.mxu0 0.0
    %884 = vmatpush1.msra.mxu0 0.0
    %885 = vmatprep.subr.mxu0 0.0
    %886 = vmatpush1.msra.mxu0 0.0
    %887 = vmatprep.subr.mxu0 0.0
    %888 = vmatpush1.msra.mxu0 0.0
    %889 = vmatprep.subr.mxu0 0.0
    %890 = vmatpush1.msra.mxu0 0.0
    %891 = vmatprep.subr.mxu0 0.0
    %892 = vmatpush1.msra.mxu0 0.0
    %893 = vmatprep.subr.mxu0 0.0
    %894 = vmatpush1.msra.mxu0 0.0
    %895 = vmatprep.mubr.f32.mxu0 0.0
    %v896 = vand.u32 %v621, 4294901760
    %v897 = vsub.f32 %v621, %v896
    %898 = vmatmul.mubr.f32.gmra.mrb[0].mxu0 %v897
    %v899 = vpop.f32.mrb[0].mxu0
    %v900 = vadd.f32 %v810, %v899
    %v901 = vpop.f32.mrb[0].mxu0
    %902 = vmatprep.mubr.f32.mxu0 0.0
    %v903 = vand.u32 %v624, 4294901760
    %v904 = vsub.f32 %v624, %v903
    %905 = vmatmul.mubr.f32.gmra.mrb[0].mxu0 %v904
    %v906 = vpop.f32.mrb[0].mxu0
    %v907 = vadd.f32 %v816, %v906
    %v908 = vpop.f32.mrb[0].mxu0
    %909 = vmatprep.mubr.f32.mxu0 0.0
    %v910 = vand.u32 %v627, 4294901760
    %v911 = vsub.f32 %v627, %v910
    %912 = vmatmul.mubr.f32.gmra.mrb[0].mxu0 %v911
    %v913 = vpop.f32.mrb[0].mxu0
    %v914 = vadd.f32 %v822, %v913
    %v915 = vpop.f32.mrb[0].mxu0
    %916 = vdwg.mxu0
    %917 = vmatprep.subr.mxu0 0.0
    %v918 = vand.u32 %v595, 4294901760
    %919 = vmatpush1.msra.mxu0 %v918
    %920 = vmatprep.subr.mxu0 0.0
    %v921 = vand.u32 %v596, 4294901760
    %922 = vmatpush1.msra.mxu0 %v921
    %923 = vmatprep.subr.mxu0 0.0
    %v924 = vand.u32 %v597, 4294901760
    %925 = vmatpush1.msra.mxu0 %v924
    %926 = vmatprep.subr.mxu0 0.0
    %927 = vmatpush1.msra.mxu0 0.0
    %928 = vmatprep.subr.mxu0 0.0
    %929 = vmatpush1.msra.mxu0 0.0
    %930 = vmatprep.subr.mxu0 0.0
    %931 = vmatpush1.msra.mxu0 0.0
    %932 = vmatprep.subr.mxu0 0.0
    %933 = vmatpush1.msra.mxu0 0.0
    %934 = vmatprep.subr.mxu0 0.0
    %935 = vmatpush1.msra.mxu0 0.0
    %936 = vmatprep.subr.mxu0 0.0
    %937 = vmatpush1.msra.mxu0 0.0
    %938 = vmatprep.subr.mxu0 0.0
    %939 = vmatpush1.msra.mxu0 0.0
    %940 = vmatprep.subr.mxu0 0.0
    %941 = vmatpush1.msra.mxu0 0.0
    %942 = vmatprep.subr.mxu0 0.0
    %943 = vmatpush1.msra.mxu0 0.0
    %944 = vmatprep.subr.mxu0 0.0
    %945 = vmatpush1.msra.mxu0 0.0
    %946 = vmatprep.subr.mxu0 0.0
    %947 = vmatpush1.msra.mxu0 0.0
    %948 = vmatprep.subr.mxu0 0.0
    %949 = vmatpush1.msra.mxu0 0.0
    %950 = vmatprep.subr.mxu0 0.0
    %951 = vmatpush1.msra.mxu0 0.0
    %952 = vmatprep.subr.mxu0 0.0
    %953 = vmatpush1.msra.mxu0 0.0
    %954 = vmatprep.subr.mxu0 0.0
    %955 = vmatpush1.msra.mxu0 0.0
    %956 = vmatprep.subr.mxu0 0.0
    %957 = vmatpush1.msra.mxu0 0.0
    %958 = vmatprep.subr.mxu0 0.0
    %959 = vmatpush1.msra.mxu0 0.0
    %960 = vmatprep.subr.mxu0 0.0
    %961 = vmatpush1.msra.mxu0 0.0
    %962 = vmatprep.subr.mxu0 0.0
    %963 = vmatpush1.msra.mxu0 0.0
    %964 = vmatprep.subr.mxu0 0.0
    %965 = vmatpush1.msra.mxu0 0.0
    %966 = vmatprep.subr.mxu0 0.0
    %967 = vmatpush1.msra.mxu0 0.0
    %968 = vmatprep.subr.mxu0 0.0
    %969 = vmatpush1.msra.mxu0 0.0
    %970 = vmatprep.subr.mxu0 0.0
    %971 = vmatpush1.msra.mxu0 0.0
    %972 = vmatprep.subr.mxu0 0.0
    %973 = vmatpush1.msra.mxu0 0.0
    %974 = vmatprep.subr.mxu0 0.0
    %975 = vmatpush1.msra.mxu0 0.0
    %976 = vmatprep.subr.mxu0 0.0
    %977 = vmatpush1.msra.mxu0 0.0
    %978 = vmatprep.subr.mxu0 0.0
    %979 = vmatpush1.msra.mxu0 0.0
    %980 = vmatprep.subr.mxu0 0.0
    %981 = vmatpush1.msra.mxu0 0.0
    %982 = vmatprep.subr.mxu0 0.0
    %983 = vmatpush1.msra.mxu0 0.0
    %984 = vmatprep.mubr.f32.mxu0 0.0
    %v985 = vand.u32 %v621, 4294901760
    %v986 = vsub.f32 %v621, %v985
    %v987 = vand.u32 %v986, 4294901760
    %988 = vmatmul.mubr.f32.gmra.mrb[0].mxu0 %v987
    %v989 = vpop.f32.mrb[0].mxu0
    %v990 = vadd.f32 %v900, %v989
    %v991 = vpop.f32.mrb[0].mxu0
    %992 = vmatprep.mubr.f32.mxu0 0.0
    %v993 = vand.u32 %v624, 4294901760
    %v994 = vsub.f32 %v624, %v993
    %v995 = vand.u32 %v994, 4294901760
    %996 = vmatmul.mubr.f32.gmra.mrb[0].mxu0 %v995
    %v997 = vpop.f32.mrb[0].mxu0
    %v998 = vadd.f32 %v907, %v997
    %v999 = vpop.f32.mrb[0].mxu0
    %1000 = vmatprep.mubr.f32.mxu0 0.0
    %v1001 = vand.u32 %v627, 4294901760
    %v1002 = vsub.f32 %v627, %v1001
    %v1003 = vand.u32 %v1002, 4294901760
    %1004 = vmatmul.mubr.f32.gmra.mrb[0].mxu0 %v1003
    %v1005 = vpop.f32.mrb[0].mxu0
    %v1006 = vadd.f32 %v914, %v1005
    %v1007 = vpop.f32.mrb[0].mxu0
    %1008 = vdwg.mxu0
    %1009 = vmatprep.subr.mxu0 0.0
    %v1010 = vand.u32 %v595, 4294901760
    %v1011 = vsub.f32 %v595, %v1010
    %v1012 = vand.u32 %v1011, 4294901760
    %1013 = vmatpush1.msra.mxu0 %v1012
    %1014 = vmatprep.subr.mxu0 0.0
    %v1015 = vand.u32 %v596, 4294901760
    %v1016 = vsub.f32 %v596, %v1015
    %v1017 = vand.u32 %v1016, 4294901760
    %1018 = vmatpush1.msra.mxu0 %v1017
    %1019 = vmatprep.subr.mxu0 0.0
    %v1020 = vand.u32 %v597, 4294901760
    %v1021 = vsub.f32 %v597, %v1020
    %v1022 = vand.u32 %v1021, 4294901760
    %1023 = vmatpush1.msra.mxu0 %v1022
    %1024 = vmatprep.subr.mxu0 0.0
    %1025 = vmatpush1.msra.mxu0 0.0
    %1026 = vmatprep.subr.mxu0 0.0
    %1027 = vmatpush1.msra.mxu0 0.0
    %1028 = vmatprep.subr.mxu0 0.0
    %1029 = vmatpush1.msra.mxu0 0.0
    %1030 = vmatprep.subr.mxu0 0.0
    %1031 = vmatpush1.msra.mxu0 0.0
    %1032 = vmatprep.subr.mxu0 0.0
    %1033 = vmatpush1.msra.mxu0 0.0
    %1034 = vmatprep.subr.mxu0 0.0
    %1035 = vmatpush1.msra.mxu0 0.0
    %1036 = vmatprep.subr.mxu0 0.0
    %1037 = vmatpush1.msra.mxu0 0.0
    %1038 = vmatprep.subr.mxu0 0.0
    %1039 = vmatpush1.msra.mxu0 0.0
    %1040 = vmatprep.subr.mxu0 0.0
    %1041 = vmatpush1.msra.mxu0 0.0
    %1042 = vmatprep.subr.mxu0 0.0
    %1043 = vmatpush1.msra.mxu0 0.0
    %1044 = vmatprep.subr.mxu0 0.0
    %1045 = vmatpush1.msra.mxu0 0.0
    %1046 = vmatprep.subr.mxu0 0.0
    %1047 = vmatpush1.msra.mxu0 0.0
    %1048 = vmatprep.subr.mxu0 0.0
    %1049 = vmatpush1.msra.mxu0 0.0
    %1050 = vmatprep.subr.mxu0 0.0
    %1051 = vmatpush1.msra.mxu0 0.0
    %1052 = vmatprep.subr.mxu0 0.0
    %1053 = vmatpush1.msra.mxu0 0.0
    %1054 = vmatprep.subr.mxu0 0.0
    %1055 = vmatpush1.msra.mxu0 0.0
    %1056 = vmatprep.subr.mxu0 0.0
    %1057 = vmatpush1.msra.mxu0 0.0
    %1058 = vmatprep.subr.mxu0 0.0
    %1059 = vmatpush1.msra.mxu0 0.0
    %1060 = vmatprep.subr.mxu0 0.0
    %1061 = vmatpush1.msra.mxu0 0.0
    %1062 = vmatprep.subr.mxu0 0.0
    %1063 = vmatpush1.msra.mxu0 0.0
    %1064 = vmatprep.subr.mxu0 0.0
    %1065 = vmatpush1.msra.mxu0 0.0
    %1066 = vmatprep.subr.mxu0 0.0
    %1067 = vmatpush1.msra.mxu0 0.0
    %1068 = vmatprep.subr.mxu0 0.0
    %1069 = vmatpush1.msra.mxu0 0.0
    %1070 = vmatprep.subr.mxu0 0.0
    %1071 = vmatpush1.msra.mxu0 0.0
    %1072 = vmatprep.subr.mxu0 0.0
    %1073 = vmatpush1.msra.mxu0 0.0
    %1074 = vmatprep.subr.mxu0 0.0
    %1075 = vmatpush1.msra.mxu0 0.0
    %1076 = vmatprep.subr.mxu0 0.0
    %1077 = vmatpush1.msra.mxu0 0.0
    %1078 = vmatprep.subr.mxu0 0.0
    %1079 = vmatpush1.msra.mxu0 0.0
    %1080 = vmatprep.subr.mxu0 0.0
    %1081 = vmatpush1.msra.mxu0 0.0
    %1082 = vmatprep.mubr.f32.mxu0 0.0
    %v1083 = vand.u32 %v621, 4294901760
    %1084 = vmatmul.mubr.f32.gmra.mrb[0].mxu0 %v1083
    %v1085 = vpop.f32.mrb[0].mxu0
    %v1086 = vadd.f32 %v990, %v1085
    %v1087 = vpop.f32.mrb[0].mxu0
    %1088 = vmatprep.mubr.f32.mxu0 0.0
    %v1089 = vand.u32 %v624, 4294901760
    %1090 = vmatmul.mubr.f32.gmra.mrb[0].mxu0 %v1089
    %v1091 = vpop.f32.mrb[0].mxu0
    %v1092 = vadd.f32 %v998, %v1091
    %v1093 = vpop.f32.mrb[0].mxu0
    %1094 = vmatprep.mubr.f32.mxu0 0.0
    %v1095 = vand.u32 %v627, 4294901760
    %1096 = vmatmul.mubr.f32.gmra.mrb[0].mxu0 %v1095
    %v1097 = vpop.f32.mrb[0].mxu0
    %v1098 = vadd.f32 %v1006, %v1097
    %v1099 = vpop.f32.mrb[0].mxu0
    %1100 = vdwg.mxu0
    %1101 = vmatprep.subr.mxu0 0.0
    %v1102 = vand.u32 %v595, 4294901760
    %1103 = vmatpush1.msra.mxu0 %v1102
    %1104 = vmatprep.subr.mxu0 0.0
    %v1105 = vand.u32 %v596, 4294901760
    %1106 = vmatpush1.msra.mxu0 %v1105
    %1107 = vmatprep.subr.mxu0 0.0
    %v1108 = vand.u32 %v597, 4294901760
    %1109 = vmatpush1.msra.mxu0 %v1108
    %1110 = vmatprep.subr.mxu0 0.0
    %1111 = vmatpush1.msra.mxu0 0.0
    %1112 = vmatprep.subr.mxu0 0.0
    %1113 = vmatpush1.msra.mxu0 0.0
    %1114 = vmatprep.subr.mxu0 0.0
    %1115 = vmatpush1.msra.mxu0 0.0
    %1116 = vmatprep.subr.mxu0 0.0
    %1117 = vmatpush1.msra.mxu0 0.0
    %1118 = vmatprep.subr.mxu0 0.0
    %1119 = vmatpush1.msra.mxu0 0.0
    %1120 = vmatprep.subr.mxu0 0.0
    %1121 = vmatpush1.msra.mxu0 0.0
    %1122 = vmatprep.subr.mxu0 0.0
    %1123 = vmatpush1.msra.mxu0 0.0
    %1124 = vmatprep.subr.mxu0 0.0
    %1125 = vmatpush1.msra.mxu0 0.0
    %1126 = vmatprep.subr.mxu0 0.0
    %1127 = vmatpush1.msra.mxu0 0.0
    %1128 = vmatprep.subr.mxu0 0.0
    %1129 = vmatpush1.msra.mxu0 0.0
    %1130 = vmatprep.subr.mxu0 0.0
    %1131 = vmatpush1.msra.mxu0 0.0
    %1132 = vmatprep.subr.mxu0 0.0
    %1133 = vmatpush1.msra.mxu0 0.0
    %1134 = vmatprep.subr.mxu0 0.0
    %1135 = vmatpush1.msra.mxu0 0.0
    %1136 = vmatprep.subr.mxu0 0.0
    %1137 = vmatpush1.msra.mxu0 0.0
    %1138 = vmatprep.subr.mxu0 0.0
    %1139 = vmatpush1.msra.mxu0 0.0
    %1140 = vmatprep.subr.mxu0 0.0
    %1141 = vmatpush1.msra.mxu0 0.0
    %1142 = vmatprep.subr.mxu0 0.0
    %1143 = vmatpush1.msra.mxu0 0.0
    %1144 = vmatprep.subr.mxu0 0.0
    %1145 = vmatpush1.msra.mxu0 0.0
    %1146 = vmatprep.subr.mxu0 0.0
    %1147 = vmatpush1.msra.mxu0 0.0
    %1148 = vmatprep.subr.mxu0 0.0
    %1149 = vmatpush1.msra.mxu0 0.0
    %1150 = vmatprep.subr.mxu0 0.0
    %1151 = vmatpush1.msra.mxu0 0.0
    %1152 = vmatprep.subr.mxu0 0.0
    %1153 = vmatpush1.msra.mxu0 0.0
    %1154 = vmatprep.subr.mxu0 0.0
    %1155 = vmatpush1.msra.mxu0 0.0
    %1156 = vmatprep.subr.mxu0 0.0
    %1157 = vmatpush1.msra.mxu0 0.0
    %1158 = vmatprep.subr.mxu0 0.0
    %1159 = vmatpush1.msra.mxu0 0.0
    %1160 = vmatprep.subr.mxu0 0.0
    %1161 = vmatpush1.msra.mxu0 0.0
    %1162 = vmatprep.subr.mxu0 0.0
    %1163 = vmatpush1.msra.mxu0 0.0
    %1164 = vmatprep.subr.mxu0 0.0
    %1165 = vmatpush1.msra.mxu0 0.0
    %1166 = vmatprep.subr.mxu0 0.0
    %1167 = vmatpush1.msra.mxu0 0.0
    %1168 = vmatprep.mubr.f32.mxu0 0.0
    %v1169 = vand.u32 %v621, 4294901760
    %1170 = vmatmul.mubr.f32.gmra.mrb[0].mxu0 %v1169
    %v1171 = vpop.f32.mrb[0].mxu0
    %v1172 = vadd.f32 %v1086, %v1171
    %v1173 = vpop.f32.mrb[0].mxu0
    %1174 = vmatprep.mubr.f32.mxu0 0.0
    %v1175 = vand.u32 %v624, 4294901760
    %1176 = vmatmul.mubr.f32.gmra.mrb[0].mxu0 %v1175
    %v1177 = vpop.f32.mrb[0].mxu0
    %v1178 = vadd.f32 %v1092, %v1177
    %v1179 = vpop.f32.mrb[0].mxu0
    %1180 = vmatprep.mubr.f32.mxu0 0.0
    %v1181 = vand.u32 %v627, 4294901760
    %1182 = vmatmul.mubr.f32.gmra.mrb[0].mxu0 %v1181
    %v1183 = vpop.f32.mrb[0].mxu0
    %v1184 = vadd.f32 %v1098, %v1183
    %v1185 = vpop.f32.mrb[0].mxu0
    %1186 = vdwg.mxu0
    %v1187 = vmax.f32 %v1172, 0.0
    %v1188 = vmax.f32 %v1178, 0.0
    %v1189 = vmax.f32 %v1184, 0.0
    %v1190 = vld [vmem:[%s5] sm:$0xf]
    %v1191 = vld [vmem:[%s6] sm:$0xf]
    %1193 = vset.pattern.permute.xlu0 0
    %1194 = vperm.xlu0 %1193, %v1191
    %v1195 = vpop.permute.xlu0 %1194
    %v1198 = vsel %vm619, %v1190, 0
    %1200 = vmatprep.subr.mxu0 0.0
    %v1201 = vand.u32 %v1187, 4294901760
    %1202 = vmatpush1.msra.mxu0 %v1201
    %1203 = vmatprep.subr.mxu0 0.0
    %v1204 = vand.u32 %v1188, 4294901760
    %1205 = vmatpush1.msra.mxu0 %v1204
    %1206 = vmatprep.subr.mxu0 0.0
    %v1207 = vand.u32 %v1189, 4294901760
    %1208 = vmatpush1.msra.mxu0 %v1207
    %1209 = vmatprep.subr.mxu0 0.0
    %1210 = vmatpush1.msra.mxu0 0.0
    %1211 = vmatprep.subr.mxu0 0.0
    %1212 = vmatpush1.msra.mxu0 0.0
    %1213 = vmatprep.subr.mxu0 0.0
    %1214 = vmatpush1.msra.mxu0 0.0
    %1215 = vmatprep.subr.mxu0 0.0
    %1216 = vmatpush1.msra.mxu0 0.0
    %1217 = vmatprep.subr.mxu0 0.0
    %1218 = vmatpush1.msra.mxu0 0.0
    %1219 = vmatprep.subr.mxu0 0.0
    %1220 = vmatpush1.msra.mxu0 0.0
    %1221 = vmatprep.subr.mxu0 0.0
    %1222 = vmatpush1.msra.mxu0 0.0
    %1223 = vmatprep.subr.mxu0 0.0
    %1224 = vmatpush1.msra.mxu0 0.0
    %1225 = vmatprep.subr.mxu0 0.0
    %1226 = vmatpush1.msra.mxu0 0.0
    %1227 = vmatprep.subr.mxu0 0.0
    %1228 = vmatpush1.msra.mxu0 0.0
    %1229 = vmatprep.subr.mxu0 0.0
    %1230 = vmatpush1.msra.mxu0 0.0
    %1231 = vmatprep.subr.mxu0 0.0
    %1232 = vmatpush1.msra.mxu0 0.0
    %1233 = vmatprep.subr.mxu0 0.0
    %1234 = vmatpush1.msra.mxu0 0.0
    %1235 = vmatprep.subr.mxu0 0.0
    %1236 = vmatpush1.msra.mxu0 0.0
    %1237 = vmatprep.subr.mxu0 0.0
    %1238 = vmatpush1.msra.mxu0 0.0
    %1239 = vmatprep.subr.mxu0 0.0
    %1240 = vmatpush1.msra.mxu0 0.0
    %1241 = vmatprep.subr.mxu0 0.0
    %1242 = vmatpush1.msra.mxu0 0.0
    %1243 = vmatprep.subr.mxu0 0.0
    %1244 = vmatpush1.msra.mxu0 0.0
    %1245 = vmatprep.subr.mxu0 0.0
    %1246 = vmatpush1.msra.mxu0 0.0
    %1247 = vmatprep.subr.mxu0 0.0
    %1248 = vmatpush1.msra.mxu0 0.0
    %1249 = vmatprep.subr.mxu0 0.0
    %1250 = vmatpush1.msra.mxu0 0.0
    %1251 = vmatprep.subr.mxu0 0.0
    %1252 = vmatpush1.msra.mxu0 0.0
    %1253 = vmatprep.subr.mxu0 0.0
    %1254 = vmatpush1.msra.mxu0 0.0
    %1255 = vmatprep.subr.mxu0 0.0
    %1256 = vmatpush1.msra.mxu0 0.0
    %1257 = vmatprep.subr.mxu0 0.0
    %1258 = vmatpush1.msra.mxu0 0.0
    %1259 = vmatprep.subr.mxu0 0.0
    %1260 = vmatpush1.msra.mxu0 0.0
    %1261 = vmatprep.subr.mxu0 0.0
    %1262 = vmatpush1.msra.mxu0 0.0
    %1263 = vmatprep.subr.mxu0 0.0
    %1264 = vmatpush1.msra.mxu0 0.0
    %1265 = vmatprep.subr.mxu0 0.0
    %1266 = vmatpush1.msra.mxu0 0.0
    %1267 = vmatprep.mubr.f32.mxu0 0.0
    %v1268 = vand.u32 %v1198, 4294901760
    %v1269 = vsub.f32 %v1198, %v1268
    %v1270 = vand.u32 %v1269, 4294901760
    %v1271 = vsub.f32 %v1269, %v1270
    %v1272 = vand.u32 %v1271, 4294901760
    %1273 = vmatmul.mubr.f32.gmra.mrb[0].mxu0 %v1272
    %v1274 = vpop.f32.mrb[0].mxu0
    %v1275 = vadd.f32 %v1195, %v1274
    %v1276 = vpop.f32.mrb[0].mxu0
    %1277 = vdwg.mxu0
    %1278 = vmatprep.subr.mxu0 0.0
    %v1279 = vand.u32 %v1187, 4294901760
    %v1280 = vsub.f32 %v1187, %v1279
    %v1281 = vand.u32 %v1280, 4294901760
    %v1282 = vsub.f32 %v1280, %v1281
    %v1283 = vand.u32 %v1282, 4294901760
    %1284 = vmatpush1.msra.mxu0 %v1283
    %1285 = vmatprep.subr.mxu0 0.0
    %v1286 = vand.u32 %v1188, 4294901760
    %v1287 = vsub.f32 %v1188, %v1286
    %v1288 = vand.u32 %v1287, 4294901760
    %v1289 = vsub.f32 %v1287, %v1288
    %v1290 = vand.u32 %v1289, 4294901760
    %1291 = vmatpush1.msra.mxu0 %v1290
    %1292 = vmatprep.subr.mxu0 0.0
    %v1293 = vand.u32 %v1189, 4294901760
    %v1294 = vsub.f32 %v1189, %v1293
    %v1295 = vand.u32 %v1294, 4294901760
    %v1296 = vsub.f32 %v1294, %v1295
    %v1297 = vand.u32 %v1296, 4294901760
    %1298 = vmatpush1.msra.mxu0 %v1297
    %1299 = vmatprep.subr.mxu0 0.0
    %1300 = vmatpush1.msra.mxu0 0.0
    %1301 = vmatprep.subr.mxu0 0.0
    %1302 = vmatpush1.msra.mxu0 0.0
    %1303 = vmatprep.subr.mxu0 0.0
    %1304 = vmatpush1.msra.mxu0 0.0
    %1305 = vmatprep.subr.mxu0 0.0
    %1306 = vmatpush1.msra.mxu0 0.0
    %1307 = vmatprep.subr.mxu0 0.0
    %1308 = vmatpush1.msra.mxu0 0.0
    %1309 = vmatprep.subr.mxu0 0.0
    %1310 = vmatpush1.msra.mxu0 0.0
    %1311 = vmatprep.subr.mxu0 0.0
    %1312 = vmatpush1.msra.mxu0 0.0
    %1313 = vmatprep.subr.mxu0 0.0
    %1314 = vmatpush1.msra.mxu0 0.0
    %1315 = vmatprep.subr.mxu0 0.0
    %1316 = vmatpush1.msra.mxu0 0.0
    %1317 = vmatprep.subr.mxu0 0.0
    %1318 = vmatpush1.msra.mxu0 0.0
    %1319 = vmatprep.subr.mxu0 0.0
    %1320 = vmatpush1.msra.mxu0 0.0
    %1321 = vmatprep.subr.mxu0 0.0
    %1322 = vmatpush1.msra.mxu0 0.0
    %1323 = vmatprep.subr.mxu0 0.0
    %1324 = vmatpush1.msra.mxu0 0.0
    %1325 = vmatprep.subr.mxu0 0.0
    %1326 = vmatpush1.msra.mxu0 0.0
    %1327 = vmatprep.subr.mxu0 0.0
    %1328 = vmatpush1.msra.mxu0 0.0
    %1329 = vmatprep.subr.mxu0 0.0
    %1330 = vmatpush1.msra.mxu0 0.0
    %1331 = vmatprep.subr.mxu0 0.0
    %1332 = vmatpush1.msra.mxu0 0.0
    %1333 = vmatprep.subr.mxu0 0.0
    %1334 = vmatpush1.msra.mxu0 0.0
    %1335 = vmatprep.subr.mxu0 0.0
    %1336 = vmatpush1.msra.mxu0 0.0
    %1337 = vmatprep.subr.mxu0 0.0
    %1338 = vmatpush1.msra.mxu0 0.0
    %1339 = vmatprep.subr.mxu0 0.0
    %1340 = vmatpush1.msra.mxu0 0.0
    %1341 = vmatprep.subr.mxu0 0.0
    %1342 = vmatpush1.msra.mxu0 0.0
    %1343 = vmatprep.subr.mxu0 0.0
    %1344 = vmatpush1.msra.mxu0 0.0
    %1345 = vmatprep.subr.mxu0 0.0
    %1346 = vmatpush1.msra.mxu0 0.0
    %1347 = vmatprep.subr.mxu0 0.0
    %1348 = vmatpush1.msra.mxu0 0.0
    %1349 = vmatprep.subr.mxu0 0.0
    %1350 = vmatpush1.msra.mxu0 0.0
    %1351 = vmatprep.subr.mxu0 0.0
    %1352 = vmatpush1.msra.mxu0 0.0
    %1353 = vmatprep.subr.mxu0 0.0
    %1354 = vmatpush1.msra.mxu0 0.0
    %1355 = vmatprep.subr.mxu0 0.0
    %1356 = vmatpush1.msra.mxu0 0.0
    %1357 = vmatprep.mubr.f32.mxu0 0.0
    %v1358 = vand.u32 %v1198, 4294901760
    %1359 = vmatmul.mubr.f32.gmra.mrb[0].mxu0 %v1358
    %v1360 = vpop.f32.mrb[0].mxu0
    %v1361 = vadd.f32 %v1275, %v1360
    %v1362 = vpop.f32.mrb[0].mxu0
    %1363 = vdwg.mxu0
    %1364 = vmatprep.subr.mxu0 0.0
    %v1365 = vand.u32 %v1187, 4294901760
    %v1366 = vsub.f32 %v1187, %v1365
    %1367 = vmatpush1.msra.mxu0 %v1366
    %1368 = vmatprep.subr.mxu0 0.0
    %v1369 = vand.u32 %v1188, 4294901760
    %v1370 = vsub.f32 %v1188, %v1369
    %1371 = vmatpush1.msra.mxu0 %v1370
    %1372 = vmatprep.subr.mxu0 0.0
    %v1373 = vand.u32 %v1189, 4294901760
    %v1374 = vsub.f32 %v1189, %v1373
    %1375 = vmatpush1.msra.mxu0 %v1374
    %1376 = vmatprep.subr.mxu0 0.0
    %1377 = vmatpush1.msra.mxu0 0.0
    %1378 = vmatprep.subr.mxu0 0.0
    %1379 = vmatpush1.msra.mxu0 0.0
    %1380 = vmatprep.subr.mxu0 0.0
    %1381 = vmatpush1.msra.mxu0 0.0
    %1382 = vmatprep.subr.mxu0 0.0
    %1383 = vmatpush1.msra.mxu0 0.0
    %1384 = vmatprep.subr.mxu0 0.0
    %1385 = vmatpush1.msra.mxu0 0.0
    %1386 = vmatprep.subr.mxu0 0.0
    %1387 = vmatpush1.msra.mxu0 0.0
    %1388 = vmatprep.subr.mxu0 0.0
    %1389 = vmatpush1.msra.mxu0 0.0
    %1390 = vmatprep.subr.mxu0 0.0
    %1391 = vmatpush1.msra.mxu0 0.0
    %1392 = vmatprep.subr.mxu0 0.0
    %1393 = vmatpush1.msra.mxu0 0.0
    %1394 = vmatprep.subr.mxu0 0.0
    %1395 = vmatpush1.msra.mxu0 0.0
    %1396 = vmatprep.subr.mxu0 0.0
    %1397 = vmatpush1.msra.mxu0 0.0
    %1398 = vmatprep.subr.mxu0 0.0
    %1399 = vmatpush1.msra.mxu0 0.0
    %1400 = vmatprep.subr.mxu0 0.0
    %1401 = vmatpush1.msra.mxu0 0.0
    %1402 = vmatprep.subr.mxu0 0.0
    %1403 = vmatpush1.msra.mxu0 0.0
    %1404 = vmatprep.subr.mxu0 0.0
    %1405 = vmatpush1.msra.mxu0 0.0
    %1406 = vmatprep.subr.mxu0 0.0
    %1407 = vmatpush1.msra.mxu0 0.0
    %1408 = vmatprep.subr.mxu0 0.0
    %1409 = vmatpush1.msra.mxu0 0.0
    %1410 = vmatprep.subr.mxu0 0.0
    %1411 = vmatpush1.msra.mxu0 0.0
    %1412 = vmatprep.subr.mxu0 0.0
    %1413 = vmatpush1.msra.mxu0 0.0
    %1414 = vmatprep.subr.mxu0 0.0
    %1415 = vmatpush1.msra.mxu0 0.0
    %1416 = vmatprep.subr.mxu0 0.0
    %1417 = vmatpush1.msra.mxu0 0.0
    %1418 = vmatprep.subr.mxu0 0.0
    %1419 = vmatpush1.msra.mxu0 0.0
    %1420 = vmatprep.subr.mxu0 0.0
    %1421 = vmatpush1.msra.mxu0 0.0
    %1422 = vmatprep.subr.mxu0 0.0
    %1423 = vmatpush1.msra.mxu0 0.0
    %1424 = vmatprep.subr.mxu0 0.0
    %1425 = vmatpush1.msra.mxu0 0.0
    %1426 = vmatprep.subr.mxu0 0.0
    %1427 = vmatpush1.msra.mxu0 0.0
    %1428 = vmatprep.subr.mxu0 0.0
    %1429 = vmatpush1.msra.mxu0 0.0
    %1430 = vmatprep.subr.mxu0 0.0
    %1431 = vmatpush1.msra.mxu0 0.0
    %1432 = vmatprep.subr.mxu0 0.0
    %1433 = vmatpush1.msra.mxu0 0.0
    %1434 = vmatprep.mubr.f32.mxu0 0.0
    %v1435 = vand.u32 %v1198, 4294901760
    %v1436 = vsub.f32 %v1198, %v1435
    %1437 = vmatmul.mubr.f32.gmra.mrb[0].mxu0 %v1436
    %v1438 = vpop.f32.mrb[0].mxu0
    %v1439 = vadd.f32 %v1361, %v1438
    %v1440 = vpop.f32.mrb[0].mxu0
    %1441 = vdwg.mxu0
    %1442 = vmatprep.subr.mxu0 0.0
    %v1443 = vand.u32 %v1187, 4294901760
    %1444 = vmatpush1.msra.mxu0 %v1443
    %1445 = vmatprep.subr.mxu0 0.0
    %v1446 = vand.u32 %v1188, 4294901760
    %1447 = vmatpush1.msra.mxu0 %v1446
    %1448 = vmatprep.subr.mxu0 0.0
    %v1449 = vand.u32 %v1189, 4294901760
    %1450 = vmatpush1.msra.mxu0 %v1449
    %1451 = vmatprep.subr.mxu0 0.0
    %1452 = vmatpush1.msra.mxu0 0.0
    %1453 = vmatprep.subr.mxu0 0.0
    %1454 = vmatpush1.msra.mxu0 0.0
    %1455 = vmatprep.subr.mxu0 0.0
    %1456 = vmatpush1.msra.mxu0 0.0
    %1457 = vmatprep.subr.mxu0 0.0
    %1458 = vmatpush1.msra.mxu0 0.0
    %1459 = vmatprep.subr.mxu0 0.0
    %1460 = vmatpush1.msra.mxu0 0.0
    %1461 = vmatprep.subr.mxu0 0.0
    %1462 = vmatpush1.msra.mxu0 0.0
    %1463 = vmatprep.subr.mxu0 0.0
    %1464 = vmatpush1.msra.mxu0 0.0
    %1465 = vmatprep.subr.mxu0 0.0
    %1466 = vmatpush1.msra.mxu0 0.0
    %1467 = vmatprep.subr.mxu0 0.0
    %1468 = vmatpush1.msra.mxu0 0.0
    %1469 = vmatprep.subr.mxu0 0.0
    %1470 = vmatpush1.msra.mxu0 0.0
    %1471 = vmatprep.subr.mxu0 0.0
    %1472 = vmatpush1.msra.mxu0 0.0
    %1473 = vmatprep.subr.mxu0 0.0
    %1474 = vmatpush1.msra.mxu0 0.0
    %1475 = vmatprep.subr.mxu0 0.0
    %1476 = vmatpush1.msra.mxu0 0.0
    %1477 = vmatprep.subr.mxu0 0.0
    %1478 = vmatpush1.msra.mxu0 0.0
    %1479 = vmatprep.subr.mxu0 0.0
    %1480 = vmatpush1.msra.mxu0 0.0
    %1481 = vmatprep.subr.mxu0 0.0
    %1482 = vmatpush1.msra.mxu0 0.0
    %1483 = vmatprep.subr.mxu0 0.0
    %1484 = vmatpush1.msra.mxu0 0.0
    %1485 = vmatprep.subr.mxu0 0.0
    %1486 = vmatpush1.msra.mxu0 0.0
    %1487 = vmatprep.subr.mxu0 0.0
    %1488 = vmatpush1.msra.mxu0 0.0
    %1489 = vmatprep.subr.mxu0 0.0
    %1490 = vmatpush1.msra.mxu0 0.0
    %1491 = vmatprep.subr.mxu0 0.0
    %1492 = vmatpush1.msra.mxu0 0.0
    %1493 = vmatprep.subr.mxu0 0.0
    %1494 = vmatpush1.msra.mxu0 0.0
    %1495 = vmatprep.subr.mxu0 0.0
    %1496 = vmatpush1.msra.mxu0 0.0
    %1497 = vmatprep.subr.mxu0 0.0
    %1498 = vmatpush1.msra.mxu0 0.0
    %1499 = vmatprep.subr.mxu0 0.0
    %1500 = vmatpush1.msra.mxu0 0.0
    %1501 = vmatprep.subr.mxu0 0.0
    %1502 = vmatpush1.msra.mxu0 0.0
    %1503 = vmatprep.subr.mxu0 0.0
    %1504 = vmatpush1.msra.mxu0 0.0
    %1505 = vmatprep.subr.mxu0 0.0
    %1506 = vmatpush1.msra.mxu0 0.0
    %1507 = vmatprep.subr.mxu0 0.0
    %1508 = vmatpush1.msra.mxu0 0.0
    %1509 = vmatprep.mubr.f32.mxu0 0.0
    %v1510 = vand.u32 %v1198, 4294901760
    %v1511 = vsub.f32 %v1198, %v1510
    %v1512 = vand.u32 %v1511, 4294901760
    %1513 = vmatmul.mubr.f32.gmra.mrb[0].mxu0 %v1512
    %v1514 = vpop.f32.mrb[0].mxu0
    %v1515 = vadd.f32 %v1439, %v1514
    %v1516 = vpop.f32.mrb[0].mxu0
    %1517 = vdwg.mxu0
    %1518 = vmatprep.subr.mxu0 0.0
    %v1519 = vand.u32 %v1187, 4294901760
    %v1520 = vsub.f32 %v1187, %v1519
    %v1521 = vand.u32 %v1520, 4294901760
    %1522 = vmatpush1.msra.mxu0 %v1521
    %1523 = vmatprep.subr.mxu0 0.0
    %v1524 = vand.u32 %v1188, 4294901760
    %v1525 = vsub.f32 %v1188, %v1524
    %v1526 = vand.u32 %v1525, 4294901760
    %1527 = vmatpush1.msra.mxu0 %v1526
    %1528 = vmatprep.subr.mxu0 0.0
    %v1529 = vand.u32 %v1189, 4294901760
    %v1530 = vsub.f32 %v1189, %v1529
    %v1531 = vand.u32 %v1530, 4294901760
    %1532 = vmatpush1.msra.mxu0 %v1531
    %1533 = vmatprep.subr.mxu0 0.0
    %1534 = vmatpush1.msra.mxu0 0.0
    %1535 = vmatprep.subr.mxu0 0.0
    %1536 = vmatpush1.msra.mxu0 0.0
    %1537 = vmatprep.subr.mxu0 0.0
    %1538 = vmatpush1.msra.mxu0 0.0
    %1539 = vmatprep.subr.mxu0 0.0
    %1540 = vmatpush1.msra.mxu0 0.0
    %1541 = vmatprep.subr.mxu0 0.0
    %1542 = vmatpush1.msra.mxu0 0.0
    %1543 = vmatprep.subr.mxu0 0.0
    %1544 = vmatpush1.msra.mxu0 0.0
    %1545 = vmatprep.subr.mxu0 0.0
    %1546 = vmatpush1.msra.mxu0 0.0
    %1547 = vmatprep.subr.mxu0 0.0
    %1548 = vmatpush1.msra.mxu0 0.0
    %1549 = vmatprep.subr.mxu0 0.0
    %1550 = vmatpush1.msra.mxu0 0.0
    %1551 = vmatprep.subr.mxu0 0.0
    %1552 = vmatpush1.msra.mxu0 0.0
    %1553 = vmatprep.subr.mxu0 0.0
    %1554 = vmatpush1.msra.mxu0 0.0
    %1555 = vmatprep.subr.mxu0 0.0
    %1556 = vmatpush1.msra.mxu0 0.0
    %1557 = vmatprep.subr.mxu0 0.0
    %1558 = vmatpush1.msra.mxu0 0.0
    %1559 = vmatprep.subr.mxu0 0.0
    %1560 = vmatpush1.msra.mxu0 0.0
    %1561 = vmatprep.subr.mxu0 0.0
    %1562 = vmatpush1.msra.mxu0 0.0
    %1563 = vmatprep.subr.mxu0 0.0
    %1564 = vmatpush1.msra.mxu0 0.0
    %1565 = vmatprep.subr.mxu0 0.0
    %1566 = vmatpush1.msra.mxu0 0.0
    %1567 = vmatprep.subr.mxu0 0.0
    %1568 = vmatpush1.msra.mxu0 0.0
    %1569 = vmatprep.subr.mxu0 0.0
    %1570 = vmatpush1.msra.mxu0 0.0
    %1571 = vmatprep.subr.mxu0 0.0
    %1572 = vmatpush1.msra.mxu0 0.0
    %1573 = vmatprep.subr.mxu0 0.0
    %1574 = vmatpush1.msra.mxu0 0.0
    %1575 = vmatprep.subr.mxu0 0.0
    %1576 = vmatpush1.msra.mxu0 0.0
    %1577 = vmatprep.subr.mxu0 0.0
    %1578 = vmatpush1.msra.mxu0 0.0
    %1579 = vmatprep.subr.mxu0 0.0
    %1580 = vmatpush1.msra.mxu0 0.0
    %1581 = vmatprep.subr.mxu0 0.0
    %1582 = vmatpush1.msra.mxu0 0.0
    %1583 = vmatprep.subr.mxu0 0.0
    %1584 = vmatpush1.msra.mxu0 0.0
    %1585 = vmatprep.subr.mxu0 0.0
    %1586 = vmatpush1.msra.mxu0 0.0
    %1587 = vmatprep.subr.mxu0 0.0
    %1588 = vmatpush1.msra.mxu0 0.0
    %1589 = vmatprep.subr.mxu0 0.0
    %1590 = vmatpush1.msra.mxu0 0.0
    %1591 = vmatprep.mubr.f32.mxu0 0.0
    %v1592 = vand.u32 %v1198, 4294901760
    %1593 = vmatmul.mubr.f32.gmra.mrb[0].mxu0 %v1592
    %v1594 = vpop.f32.mrb[0].mxu0
    %v1595 = vadd.f32 %v1515, %v1594
    %v1596 = vpop.f32.mrb[0].mxu0
    %1597 = vdwg.mxu0
    %1598 = vmatprep.subr.mxu0 0.0
    %v1599 = vand.u32 %v1187, 4294901760
    %1600 = vmatpush1.msra.mxu0 %v1599
    %1601 = vmatprep.subr.mxu0 0.0
    %v1602 = vand.u32 %v1188, 4294901760
    %1603 = vmatpush1.msra.mxu0 %v1602
    %1604 = vmatprep.subr.mxu0 0.0
    %v1605 = vand.u32 %v1189, 4294901760
    %1606 = vmatpush1.msra.mxu0 %v1605
    %1607 = vmatprep.subr.mxu0 0.0
    %1608 = vmatpush1.msra.mxu0 0.0
    %1609 = vmatprep.subr.mxu0 0.0
    %1610 = vmatpush1.msra.mxu0 0.0
    %1611 = vmatprep.subr.mxu0 0.0
    %1612 = vmatpush1.msra.mxu0 0.0
    %1613 = vmatprep.subr.mxu0 0.0
    %1614 = vmatpush1.msra.mxu0 0.0
    %1615 = vmatprep.subr.mxu0 0.0
    %1616 = vmatpush1.msra.mxu0 0.0
    %1617 = vmatprep.subr.mxu0 0.0
    %1618 = vmatpush1.msra.mxu0 0.0
    %1619 = vmatprep.subr.mxu0 0.0
    %1620 = vmatpush1.msra.mxu0 0.0
    %1621 = vmatprep.subr.mxu0 0.0
    %1622 = vmatpush1.msra.mxu0 0.0
    %1623 = vmatprep.subr.mxu0 0.0
    %1624 = vmatpush1.msra.mxu0 0.0
    %1625 = vmatprep.subr.mxu0 0.0
    %1626 = vmatpush1.msra.mxu0 0.0
    %1627 = vmatprep.subr.mxu0 0.0
    %1628 = vmatpush1.msra.mxu0 0.0
    %1629 = vmatprep.subr.mxu0 0.0
    %1630 = vmatpush1.msra.mxu0 0.0
    %1631 = vmatprep.subr.mxu0 0.0
    %1632 = vmatpush1.msra.mxu0 0.0
    %1633 = vmatprep.subr.mxu0 0.0
    %1634 = vmatpush1.msra.mxu0 0.0
    %1635 = vmatprep.subr.mxu0 0.0
    %1636 = vmatpush1.msra.mxu0 0.0
    %1637 = vmatprep.subr.mxu0 0.0
    %1638 = vmatpush1.msra.mxu0 0.0
    %1639 = vmatprep.subr.mxu0 0.0
    %1640 = vmatpush1.msra.mxu0 0.0
    %1641 = vmatprep.subr.mxu0 0.0
    %1642 = vmatpush1.msra.mxu0 0.0
    %1643 = vmatprep.subr.mxu0 0.0
    %1644 = vmatpush1.msra.mxu0 0.0
    %1645 = vmatprep.subr.mxu0 0.0
    %1646 = vmatpush1.msra.mxu0 0.0
    %1647 = vmatprep.subr.mxu0 0.0
    %1648 = vmatpush1.msra.mxu0 0.0
    %1649 = vmatprep.subr.mxu0 0.0
    %1650 = vmatpush1.msra.mxu0 0.0
    %1651 = vmatprep.subr.mxu0 0.0
    %1652 = vmatpush1.msra.mxu0 0.0
    %1653 = vmatprep.subr.mxu0 0.0
    %1654 = vmatpush1.msra.mxu0 0.0
    %1655 = vmatprep.subr.mxu0 0.0
    %1656 = vmatpush1.msra.mxu0 0.0
    %1657 = vmatprep.subr.mxu0 0.0
    %1658 = vmatpush1.msra.mxu0 0.0
    %1659 = vmatprep.subr.mxu0 0.0
    %1660 = vmatpush1.msra.mxu0 0.0
    %1661 = vmatprep.subr.mxu0 0.0
    %1662 = vmatpush1.msra.mxu0 0.0
    %1663 = vmatprep.subr.mxu0 0.0
    %1664 = vmatpush1.msra.mxu0 0.0
    %1665 = vmatprep.mubr.f32.mxu0 0.0
    %v1666 = vand.u32 %v1198, 4294901760
    %1667 = vmatmul.mubr.f32.gmra.mrb[0].mxu0 %v1666
    %v1668 = vpop.f32.mrb[0].mxu0
    %v1669 = vadd.f32 %v1595, %v1668
    %v1670 = vpop.f32.mrb[0].mxu0
    %1671 = vdwg.mxu0
    %1672 = vst [vmem:[#allocation2] sm:$0xf] %v1669
    // Predicated region
    $region30: #{tpu_custom_call.1} parent=1 // pred_check
      _
    $region31: #{tpu_custom_call.1} parent=1 // pred_check_branch
      %1674 = sbr.rel (0) target = $region33
    $region32: #{tpu_custom_call.1} parent=1 // pred_region
      %s1676 = ssub.s32 64, 64
      %1677 = vsyncadd [#allocation3], %s1676
      %s1679 = sshll.u32 [#allocation2], 4
      %s1680 = int_to_ptr.vmem [resolvable:$true] %s1679
      %1682 = dma.vmem_to_hbm [thread:$0]  %s1680, 64, %s7, [#allocation3]
    $region33: #{tpu_custom_call.1} parent=1 // pred_fallthru
      _
    // Predicated region
    $region34: #{tpu_custom_call.1} parent=1 // pred_check
      _
    $region35: #{tpu_custom_call.1} parent=1 // pred_check_branch
      %1684 = sbr.rel (0) target = $region37
    $region36: #{tpu_custom_call.1} parent=1 // pred_region
      %1685 = dma.done [#allocation3], 64
    $region37: #{tpu_custom_call.1} parent=1 // pred_fallthru
      _
    %1686 = vsyncpa [#allocation3], 1

</llo_original>
